<compile_context>
chip_gen: v7x
topology: tpu7x:2x2x1
jax: 0.10.0
libtpu: 0.0.40
codegen_flags: <defaults>
</compile_context>

<pallas_src>
import functools

import jax
import jax.numpy as jnp
from jax import lax
from jax.experimental import pallas as pl
from jax.experimental.pallas import tpu as pltpu


def _round_up(x, m):
    return (x + m - 1) // m * m


# ----------------------------------------------------------------------------
# Pallas kernel: one (TM, TN) output tile, full-K contraction in a single step.
# ----------------------------------------------------------------------------
def _conv_mm_kernel(p_ref, w_ref, b_ref, o_ref, *, apply_lrelu):
    # bf16 x bf16 -> f32 on the MXU, full K depth in one accumulation burst.
    acc = jnp.dot(p_ref[...], w_ref[...], preferred_element_type=jnp.float32)
    acc = acc + b_ref[...]                       # f32 bias, broadcast over rows
    if apply_lrelu:
        acc = jnp.maximum(acc, 0.2 * acc)        # LeakyReLU(0.2): vmul + vmax
    o_ref[...] = acc.astype(o_ref.dtype)         # bf16 except for the last layer


def _matmul_bias_act_pallas(patches, w_mat, b, apply_lrelu, out_dtype):
    """out = act(patches @ w_mat + b) on the MXU; patches/w_mat in bf16."""
    M, K = patches.shape
    Cout = w_mat.shape[1]

    # N tiling: lane-dense 128/256-wide tiles when possible; a block dim equal
    # to the (small) full Cout is legal otherwise.
    if Cout % 128 == 0:
        Np = Cout
        TN = 256 if Cout % 256 == 0 else 128
    elif Cout > 128:
        Np = _round_up(Cout, 128)
        TN = 128
    else:
        Np, TN = Cout, Cout

    if Np != Cout:  # never triggers for this model's channel counts
        w_mat = jnp.pad(w_mat, ((0, 0), (0, Np - Cout)))
        b = jnp.pad(b, ((0, Np - Cout),))

    TM = 256 if M >= 256 else 128
    grid = (pl.cdiv(M, TM), Np // TN)

    b2 = b.astype(jnp.float32).reshape(1, Np)
    out_isz = jnp.dtype(out_dtype).itemsize

    out = pl.pallas_call(
        functools.partial(_conv_mm_kernel, apply_lrelu=apply_lrelu),
        out_shape=jax.ShapeDtypeStruct((M, Np), out_dtype),
        grid_spec=pltpu.PrefetchScalarGridSpec(
            num_scalar_prefetch=0,
            grid=grid,
            in_specs=[
                pl.BlockSpec((TM, K), lambda i, j: (i, 0)),   # full-K patch tile
                pl.BlockSpec((K, TN), lambda i, j: (0, j)),   # full-K weight tile
                pl.BlockSpec((1, TN), lambda i, j: (0, j)),   # f32 bias row
            ],
            out_specs=pl.BlockSpec((TM, TN), lambda i, j: (i, j)),
        ),
        compiler_params=pltpu.CompilerParams(
            dimension_semantics=("parallel", "parallel"),
            vmem_limit_bytes=32 * 1024 * 1024,   # footprint <= ~10 MiB; v7x-safe
        ),
        cost_estimate=pl.CostEstimate(
            flops=2 * M * K * Np,
            transcendentals=0,
            bytes_accessed=M * K * 2 + K * Np * 2 + M * Np * out_isz,
        ),
    )(patches.astype(jnp.bfloat16), w_mat.astype(jnp.bfloat16), b2)

    if Np != Cout:
        out = out[:, :Cout]
    return out


def conv2d_3x3(x_nhwc, w_mat, b, cin, cout, stride, apply_lrelu, out_dtype):
    """3x3 conv, padding=1, NHWC in/out. w_mat is (9*Cin, Cout) bf16."""
    N, H, W, _ = x_nhwc.shape
    OH = (H + 2 - 3) // stride + 1
    OW = (W + 2 - 3) // stride + 1

    # TODO(synk): fuse im2col/halo extraction into the kernel to avoid the 9x
    # activation read amplification; kept as bf16 wrapper glue for now.
    xp = jnp.pad(x_nhwc, ((0, 0), (1, 1), (1, 1), (0, 0)))
    cols = []
    for kh in range(3):
        for kw in range(3):
            cols.append(xp[:, kh:kh + stride * (OH - 1) + 1:stride,
                              kw:kw + stride * (OW - 1) + 1:stride, :])
    # (N, OH, OW, 9, Cin) -> (M, 9*Cin); K index = (kh*3+kw)*Cin + cin
    patches = jnp.stack(cols, axis=3).reshape(N * OH * OW, 9 * cin)

    M = N * OH * OW
    if M < 128 or K_too_big(9 * cin):
        # Tiny spatial tail: launch/pipeline overhead dwarfs one fused XLA dot.
        acc = jnp.dot(patches.astype(jnp.bfloat16), w_mat,
                      preferred_element_type=jnp.float32) + b[None, :]
        if apply_lrelu:
            acc = jnp.maximum(acc, 0.2 * acc)
        out = acc.astype(out_dtype)
    else:
        out = _matmul_bias_act_pallas(patches, w_mat, b, apply_lrelu, out_dtype)

    return out.reshape(N, OH, OW, cout)


def K_too_big(k):
    # Full-K tiles of this depth would blow the VMEM budget; this model's max
    # K is 4608 so the guard never fires here.
    return k > 8192


def spectral_normalize(w_oihw, n_iter=30):
    """W / sigma_max(W.reshape(Cout, -1)) via power iteration.

    TODO(synk): PyTorch's spectral_norm does 1 step per forward with a
    persistent u vector; here we iterate to convergence once at weight-prep
    time (same fixed point, not bit-identical to a non-converged u state).
    """
    cout = w_oihw.shape[0]
    wm = w_oihw.reshape(cout, -1)
    u0 = jnp.ones((cout,), jnp.float32) / jnp.sqrt(jnp.float32(cout))
    v0 = jnp.zeros((wm.shape[1],), jnp.float32)

    def body(_, uv):
        u, v = uv
        v = wm.T @ u
        v = v / (jnp.linalg.norm(v) + 1e-12)
        u = wm @ v
        u = u / (jnp.linalg.norm(u) + 1e-12)
        return (u, v)

    u, v = lax.fori_loop(0, n_iter, body, (u0, v0))
    sigma = u @ (wm @ v)
    return w_oihw / sigma


def init_params(key, n_channels=1, n_classes=1):
    """Deterministic init matching the module: weights ~ N(0, 0.02), bias = 0."""
    specs = [
        (n_channels, 64),
        (64, 128),
        (128, 256),
        (256, 512),
        (512, n_classes),
    ]
    params = []
    keys = jax.random.split(key, len(specs))
    for k, (cin, cout) in zip(keys, specs):
        w = 0.02 * jax.random.normal(k, (cout, cin, 3, 3), dtype=jnp.float32)
        b = jnp.zeros((cout,), jnp.float32)
        params.append((w, b))
    return params


def prepare_params(params):
    """One-time weight prep hoisted out of the forward path (perf review):
    spectral norm, (Cout,Cin,3,3)->(9*Cin,Cout) reshape, bf16 cast."""
    spectral = (False, True, True, True, False)
    prepared = []
    for (w, b), sn in zip(params, spectral):
        if sn:
            w = spectral_normalize(w)
        cout, cin = w.shape[0], w.shape[1]
        w_mat = jnp.transpose(w, (2, 3, 1, 0)).reshape(9 * cin, cout)
        prepared.append((w_mat.astype(jnp.bfloat16), b.astype(jnp.float32)))
    return prepared


@jax.jit
def discriminator_forward(prepared, img_nchw):
    # NCHW (PyTorch) in / out; NHWC bf16 internally (single cast, no f32 pass).
    x = jnp.transpose(img_nchw, (0, 2, 3, 1)).astype(jnp.bfloat16)
    strides = (2, 2, 2, 1, 1)
    n_layers = len(prepared)
    for i, ((w_mat, b), s) in enumerate(zip(prepared, strides)):
        cin = w_mat.shape[0] // 9
        cout = w_mat.shape[1]
        last = i == n_layers - 1
        out_dtype = jnp.float32 if last else jnp.bfloat16
        x = conv2d_3x3(x, w_mat, b, cin, cout, s,
                       apply_lrelu=not last, out_dtype=out_dtype)
    return jnp.transpose(x, (0, 3, 1, 2))


if __name__ == "__main__":
    key = jax.random.PRNGKey(0)
    pkey, xkey = jax.random.split(key)
    params = init_params(pkey, n_channels=1, n_classes=1)
    prepared = prepare_params(params)

    # 32x32 input so layers 1 and 2 exercise the Pallas path (M = 512 and 128).
    img = jax.random.normal(xkey, (2, 1, 32, 32), dtype=jnp.float32)  # NCHW

    out = discriminator_forward(prepared, img)
    out = jax.block_until_ready(out)

    # 32 -> 16 -> 8 -> 4 -> 4 -> 4 spatially; channels -> n_classes=1
    assert out.shape == (2, 1, 4, 4), out.shape
    print("KERNEL_OK")
</pallas_src>

<mosaic_0001>
module attributes {stable_mosaic.version = 11 : i64} {
  func.func @_conv_mm_kernel(%arg0: i32, %arg1: i32, %arg2: memref<256x9xbf16, #tpu.memory_space<vmem>>, %arg3: memref<9x64xbf16, #tpu.memory_space<vmem>>, %arg4: memref<1x64xf32, #tpu.memory_space<vmem>>, %arg5: memref<256x64xbf16, #tpu.memory_space<vmem>>) attributes {dimension_semantics = [#tpu.dimension_semantics<parallel>, #tpu.dimension_semantics<parallel>], iteration_bounds = array<i64: 2, 1>, scalar_prefetch = 0 : i64, scratch_operands = 0 : i64, tpu.core_type = #tpu.core_type<tc>, window_params = [{transform_indices = @transform_0, window_bounds = array<i64: 256, 9>}, {transform_indices = @transform_1, window_bounds = array<i64: 9, 64>}, {transform_indices = @transform_2, window_bounds = array<i64: 1, 64>}, {transform_indices = @transform_3, window_bounds = array<i64: 256, 64>}]} {
    %c0 = arith.constant 0 : index
    %c0_0 = arith.constant 0 : index
    %0 = vector.load %arg2[%c0, %c0_0] : memref<256x9xbf16, #tpu.memory_space<vmem>>, vector<256x9xbf16>
    %c0_1 = arith.constant 0 : index
    %c0_2 = arith.constant 0 : index
    %1 = vector.load %arg3[%c0_1, %c0_2] : memref<9x64xbf16, #tpu.memory_space<vmem>>, vector<9x64xbf16>
    %cst = arith.constant dense<0.000000e+00> : vector<256x64xf32>
    %2 = tpu.matmul %0, %1, %cst {dimension_numbers = #tpu.dot_dimension_numbers<[1], [0], [0], [1], [0, 0, 1, 1], [], []>} : vector<256x9xbf16>, vector<9x64xbf16>, vector<256x64xf32> -> vector<256x64xf32>
    %c0_3 = arith.constant 0 : index
    %c0_4 = arith.constant 0 : index
    %3 = vector.load %arg4[%c0_3, %c0_4] : memref<1x64xf32, #tpu.memory_space<vmem>>, vector<1x64xf32>
    %4 = vector.broadcast %3 : vector<1x64xf32> to vector<256x64xf32>
    %5 = arith.addf %2, %4 : vector<256x64xf32>
    %cst_5 = arith.constant 2.000000e-01 : f32
    %6 = vector.broadcast %cst_5 : f32 to vector<256x64xf32>
    %7 = arith.mulf %6, %5 : vector<256x64xf32>
    %8 = arith.maximumf %5, %7 : vector<256x64xf32>
    %9 = arith.truncf %8 : vector<256x64xf32> to vector<256x64xbf16>
    %c0_6 = arith.constant 0 : index
    %c0_7 = arith.constant 0 : index
    %10 = vector.load %arg5[%c0_6, %c0_7] : memref<256x64xbf16, #tpu.memory_space<vmem>>, vector<256x64xbf16>
    tpu.vector_store %arg5[%c0_6, %c0_7], %9 {strides = array<i32>} : memref<256x64xbf16, #tpu.memory_space<vmem>>, vector<256x64xbf16>,
    return
  }
  func.func @transform_0(%arg0: i32, %arg1: i32) -> (i32, i32) {
    %c0_i32 = arith.constant 0 : i32
    %c0_i32_0 = arith.constant 0 : i32
    return %arg0, %c0_i32 : i32, i32
  }
  func.func @transform_1(%arg0: i32, %arg1: i32) -> (i32, i32) {
    %c0_i32 = arith.constant 0 : i32
    %c0_i32_0 = arith.constant 0 : i32
    return %c0_i32, %arg1 : i32, i32
  }
  func.func @transform_2(%arg0: i32, %arg1: i32) -> (i32, i32) {
    %c0_i32 = arith.constant 0 : i32
    %c0_i32_0 = arith.constant 0 : i32
    return %c0_i32, %arg1 : i32, i32
  }
  func.func @transform_3(%arg0: i32, %arg1: i32) -> (i32, i32) {
    %c0_i32 = arith.constant 0 : i32
    return %arg0, %arg1 : i32, i32
  }
}

module attributes {stable_mosaic.version = 11 : i64} {
  func.func @_conv_mm_kernel(%arg0: i32, %arg1: i32, %arg2: memref<128x576xbf16, #tpu.memory_space<vmem>>, %arg3: memref<576x128xbf16, #tpu.memory_space<vmem>>, %arg4: memref<1x128xf32, #tpu.memory_space<vmem>>, %arg5: memref<128x128xbf16, #tpu.memory_space<vmem>>) attributes {dimension_semantics = [#tpu.dimension_semantics<parallel>, #tpu.dimension_semantics<parallel>], iteration_bounds = array<i64: 1, 1>, scalar_prefetch = 0 : i64, scratch_operands = 0 : i64, tpu.core_type = #tpu.core_type<tc>, window_params = [{transform_indices = @transform_0, window_bounds = array<i64: 128, 576>}, {transform_indices = @transform_1, window_bounds = array<i64: 576, 128>}, {transform_indices = @transform_2, window_bounds = array<i64: 1, 128>}, {transform_indices = @transform_3, window_bounds = array<i64: 128, 128>}]} {
    %c0 = arith.constant 0 : index
    %c0_0 = arith.constant 0 : index
    %0 = vector.load %arg2[%c0, %c0_0] : memref<128x576xbf16, #tpu.memory_space<vmem>>, vector<128x576xbf16>
    %c0_1 = arith.constant 0 : index
    %c0_2 = arith.constant 0 : index
    %1 = vector.load %arg3[%c0_1, %c0_2] : memref<576x128xbf16, #tpu.memory_space<vmem>>, vector<576x128xbf16>
    %cst = arith.constant dense<0.000000e+00> : vector<128x128xf32>
    %2 = tpu.matmul %0, %1, %cst {dimension_numbers = #tpu.dot_dimension_numbers<[1], [0], [0], [1], [0, 0, 1, 1], [], []>} : vector<128x576xbf16>, vector<576x128xbf16>, vector<128x128xf32> -> vector<128x128xf32>
    %c0_3 = arith.constant 0 : index
    %c0_4 = arith.constant 0 : index
    %3 = vector.load %arg4[%c0_3, %c0_4] : memref<1x128xf32, #tpu.memory_space<vmem>>, vector<1x128xf32>
    %4 = vector.broadcast %3 : vector<1x128xf32> to vector<128x128xf32>
    %5 = arith.addf %2, %4 : vector<128x128xf32>
    %cst_5 = arith.constant 2.000000e-01 : f32
    %6 = vector.broadcast %cst_5 : f32 to vector<128x128xf32>
    %7 = arith.mulf %6, %5 : vector<128x128xf32>
    %8 = arith.maximumf %5, %7 : vector<128x128xf32>
    %9 = arith.truncf %8 : vector<128x128xf32> to vector<128x128xbf16>
    %c0_6 = arith.constant 0 : index
    %c0_7 = arith.constant 0 : index
    %10 = vector.load %arg5[%c0_6, %c0_7] : memref<128x128xbf16, #tpu.memory_space<vmem>>, vector<128x128xbf16>
    tpu.vector_store %arg5[%c0_6, %c0_7], %9 {strides = array<i32>} : memref<128x128xbf16, #tpu.memory_space<vmem>>, vector<128x128xbf16>,
    return
  }
  func.func @transform_0(%arg0: i32, %arg1: i32) -> (i32, i32) {
    %c0_i32 = arith.constant 0 : i32
    %c0_i32_0 = arith.constant 0 : i32
    return %arg0, %c0_i32 : i32, i32
  }
  func.func @transform_1(%arg0: i32, %arg1: i32) -> (i32, i32) {
    %c0_i32 = arith.constant 0 : i32
    %c0_i32_0 = arith.constant 0 : i32
    return %c0_i32, %arg1 : i32, i32
  }
  func.func @transform_2(%arg0: i32, %arg1: i32) -> (i32, i32) {
    %c0_i32 = arith.constant 0 : i32
    %c0_i32_0 = arith.constant 0 : i32
    return %c0_i32, %arg1 : i32, i32
  }
  func.func @transform_3(%arg0: i32, %arg1: i32) -> (i32, i32) {
    %c0_i32 = arith.constant 0 : i32
    return %arg0, %arg1 : i32, i32
  }
}

</mosaic_0001>

<llo_original>
// kernel: discriminator_forward.2
$region0: #{discriminator_forward.2}
  #allocation0 [shape = 'u32[]', space=smem, size = 0x4, offset = 0x4, fixed_abs, tag = 'smem constant byte address 0x4 - core index']
  #allocation1 [shape = 'u32[144,128]{1,0:T(1,128)}', space=vmem, size = 0x12000, scoped, tag = 'internal scratch']
  %s0 = inlined_call_operand.vmem [shape: bf16[512,9], index: 0, kind: input, shape index: {}]
  %s1 = inlined_call_operand.hbm [shape: bf16[9,64], index: 1, kind: input, shape index: {}]
  %s2 = inlined_call_operand.hbm [shape: f32[1,64], index: 2, kind: input, shape index: {}]
  %s3 = inlined_call_operand.vmem [shape: bf16[512,64], index: 3, kind: output, shape index: {}]
  %s4 = sld [smem:[#allocation0]]
  $region53: #{discriminator_forward.2} parent=0
    _
  %s6 = ssub.s32 1, %s4
  %s7 = scalar_select 0, %s6, %s4
  $region1: #{discriminator_forward.2} parent=0
    #allocation2 [shape = 'u8[4096]{0}', space=vmem, size = 0x1000, scoped, tag = 'input window, operand 1, single buffered']
    #allocation3 [shape = 's32[2]{0}', space=sflag, size = 0x8, scoped, tag = 'scoped memory for discriminator_forward.2']
    #allocation4 [shape = 'u8[512]{0}', space=vmem, size = 0x400, scoped, tag = 'input window, operand 2, single buffered']
    #allocation5 [shape = 's32[1]{0}', space=sflag, size = 0x4, scoped, tag = 'scoped memory for discriminator_forward.2']
    %8 = vsyncpa [#allocation3], 0
    %9 = vsyncpa [#allocation5], 0
    loop: start=0, step=1, limit=4
    $region2: #{discriminator_forward.2} parent=1 // loop_pre_header
      _
    $region3: #{discriminator_forward.2} parent=1 // loop_header
      %s11 = sphi 0, %s15
      %p12 = scmp.ge.s32.totalorder %s11, 4
      %s18 = sphi 0, %s30
      %s19 = sphi 0, %s26
      %s20 = sphi 0, %s18
      %s21 = sphi 0, %s19
      %s22 = sphi 0, %s20
      %s23 = sphi 0, %s21
      %s33 = sphi 0, %s35
      %s36 = sphi 0, %s33
      %s37 = sphi 0, %s36
      %s53 = sphi 0, %s37
      %s59 = sphi 0, %s61
      %s62 = sphi 0, %s59
      %s63 = sphi 0, %s62
      %s79 = sphi 0, %s63
      %s85 = sphi 0, %s87
      %s88 = sphi 0, %s85
      %s89 = sphi 0, %s88
      %s105 = sphi 0, %s89
      %s113 = sphi 0, %s115
      %s116 = sphi 0, %s113
      %s117 = sphi 0, %s116
      %s133 = sphi 0, %s117
    $region4: #{discriminator_forward.2} parent=1 // loop_header_branch
      %14 = sbr.rel (%p12) target = $region8
    $region5: #{discriminator_forward.2} parent=1 // loop_body
      %s16 = ssub.s32 %s11, 1
      %s17 = ssub.s32 %s11, 2
      %s24 = sadd.s32 1, %s19
      %p25 = scmp.ge.s32.totalorder %s24, 1
      %s26 = scalar_select %p25, 0, %s24
      %s27 = sadd.s32 1, %s18
      %s28 = scalar_select %p25, %s27, %s18
      %p29 = scmp.ge.s32.totalorder %s28, 2
      %s30 = scalar_select %p29, 0, %s28
      %s31 = ssub.s32 %s18, %s30
      %p32 = scmp.eq.s32.totalorder %s31, 0
      %s34 = sadd.s32 %s33, 1
      %s35 = scalar_select %p32, %s33, %s34
      %p38 = pneg %p32
      %p39 = scmp.eq.s32.totalorder %s11, 1
      %p40 = por %p38, %p39
      %p41 = scmp.ne.s32.totalorder %s33, %s36
      %p42 = scmp.eq.s32.totalorder %s11, 0
      %p43 = por %p41, %p42
      %p44 = scmp.ne.s32.totalorder %s33, %s36
      %p45 = scmp.eq.s32.totalorder %s16, 1
      %p46 = por %p44, %p45
      %p47 = scmp.ne.s32.totalorder %s36, %s37
      %p48 = scmp.eq.s32.totalorder %s16, 0
      %p49 = por %p47, %p48
      %p50 = scmp.ne.s32.totalorder %s36, %s37
      %p51 = scmp.eq.s32.totalorder %s17, 1
      %p52 = por %p50, %p51
      %p54 = scmp.ne.s32.totalorder %s37, %s53
      %p55 = scmp.eq.s32.totalorder %s17, 0
      %p56 = por %p54, %p55
      %s57 = ssub.s32 %s19, %s26
      %p58 = scmp.eq.s32.totalorder %s57, 0
      %s60 = sadd.s32 %s59, 1
      %s61 = scalar_select %p58, %s59, %s60
      %p64 = pneg %p58
      %p65 = scmp.eq.s32.totalorder %s11, 1
      %p66 = por %p64, %p65
      %p67 = scmp.ne.s32.totalorder %s59, %s62
      %p68 = scmp.eq.s32.totalorder %s11, 0
      %p69 = por %p67, %p68
      %p70 = scmp.ne.s32.totalorder %s59, %s62
      %p71 = scmp.eq.s32.totalorder %s16, 1
      %p72 = por %p70, %p71
      %p73 = scmp.ne.s32.totalorder %s62, %s63
      %p74 = scmp.eq.s32.totalorder %s16, 0
      %p75 = por %p73, %p74
      %p76 = scmp.ne.s32.totalorder %s62, %s63
      %p77 = scmp.eq.s32.totalorder %s17, 1
      %p78 = por %p76, %p77
      %p80 = scmp.ne.s32.totalorder %s63, %s79
      %p81 = scmp.eq.s32.totalorder %s17, 0
      %p82 = por %p80, %p81
      %s83 = ssub.s32 %s19, %s26
      %p84 = scmp.eq.s32.totalorder %s83, 0
      %s86 = sadd.s32 %s85, 1
      %s87 = scalar_select %p84, %s85, %s86
      %p90 = pneg %p84
      %p91 = scmp.eq.s32.totalorder %s11, 1
      %p92 = por %p90, %p91
      %p93 = scmp.ne.s32.totalorder %s85, %s88
      %p94 = scmp.eq.s32.totalorder %s11, 0
      %p95 = por %p93, %p94
      %p96 = scmp.ne.s32.totalorder %s85, %s88
      %p97 = scmp.eq.s32.totalorder %s16, 1
      %p98 = por %p96, %p97
      %p99 = scmp.ne.s32.totalorder %s88, %s89
      %p100 = scmp.eq.s32.totalorder %s16, 0
      %p101 = por %p99, %p100
      %p102 = scmp.ne.s32.totalorder %s88, %s89
      %p103 = scmp.eq.s32.totalorder %s17, 1
      %p104 = por %p102, %p103
      %p106 = scmp.ne.s32.totalorder %s89, %s105
      %p107 = scmp.eq.s32.totalorder %s17, 0
      %p108 = por %p106, %p107
      %s109 = ssub.s32 %s18, %s30
      %s110 = ssub.s32 %s19, %s26
      %s111 = sor.u32 %s109, %s110
      %p112 = scmp.eq.s32.totalorder %s111, 0
      %s114 = sadd.s32 %s113, 1
      %s115 = scalar_select %p112, %s113, %s114
      %p118 = pneg %p112
      %p119 = scmp.eq.s32.totalorder %s11, 1
      %p120 = por %p118, %p119
      %p121 = scmp.ne.s32.totalorder %s113, %s116
      %p122 = scmp.eq.s32.totalorder %s11, 0
      %p123 = por %p121, %p122
      %p124 = scmp.ne.s32.totalorder %s113, %s116
      %p125 = scmp.eq.s32.totalorder %s16, 1
      %p126 = por %p124, %p125
      %p127 = scmp.ne.s32.totalorder %s116, %s117
      %p128 = scmp.eq.s32.totalorder %s16, 0
      %p129 = por %p127, %p128
      %p130 = scmp.ne.s32.totalorder %s116, %s117
      %p131 = scmp.eq.s32.totalorder %s17, 1
      %p132 = por %p130, %p131
      %p134 = scmp.ne.s32.totalorder %s117, %s133
      %p135 = scmp.eq.s32.totalorder %s17, 0
      %p136 = por %p134, %p135
      %p137 = scmp.le.s32.totalorder 1, %s11
      %p138 = scmp.lt.s32.totalorder %s11, 3
      %p139 = pnand %p137, %p138
      %p140 = pneg %p139
      // Predicated region
      $region9: #{discriminator_forward.2} parent=5 // pred_check
        _
      $region10: #{discriminator_forward.2} parent=5 // pred_check_branch
        %142 = sbr.rel (%p139) target = $region12
      $region11: #{discriminator_forward.2} parent=5 // pred_region
        %s143 = ssub.s32 %s11, 1
        // Predicated region
        $region13: #{discriminator_forward.2} parent=11 // pred_check
          %p144 = pneg %p75
        $region14: #{discriminator_forward.2} parent=11 // pred_check_branch
          %146 = sbr.rel (%p144) target = $region16
        $region15: #{discriminator_forward.2} parent=11 // pred_region
          %s148 = ssub.s32 128, 128
          %149 = vsyncadd [#allocation3], %s148
          %s150 = smul.addr %s21, 64
          %s151 = scalar_lea.hbm %s1, %s150
          %s152 = sshll.u32 [#allocation2], 4
          %s153 = int_to_ptr.vmem [resolvable:$true] %s152
          %158 = dma.hbm_to_vmem [thread:$0]  %s151, 128, %s153, [#allocation3], 64, 64, 4
        $region16: #{discriminator_forward.2} parent=11 // pred_fallthru
          _
        // Predicated region
        $region17: #{discriminator_forward.2} parent=11 // pred_check
          %p159 = pneg %p101
        $region18: #{discriminator_forward.2} parent=11 // pred_check_branch
          %161 = sbr.rel (%p159) target = $region20
        $region19: #{discriminator_forward.2} parent=11 // pred_region
          %s163 = ssub.s32 16, 16
          %164 = vsyncadd [#allocation5], %s163
          %s165 = smul.addr %s21, 16
          %s166 = scalar_lea.hbm %s2, %s165
          %s168 = sshll.u32 [#allocation4], 4
          %s169 = int_to_ptr.vmem [resolvable:$true] %s168
          %171 = dma.hbm_to_vmem [thread:$0]  %s166, 16, %s169, [#allocation5]
        $region20: #{discriminator_forward.2} parent=11 // pred_fallthru
          _
      $region12: #{discriminator_forward.2} parent=5 // pred_fallthru
        _
      %p172 = scmp.lt.s32.totalorder %s11, 2
      // Predicated region
      $region21: #{discriminator_forward.2} parent=5 // pred_check
        %p173 = pneg %p172
      $region22: #{discriminator_forward.2} parent=5 // pred_check_branch
        %175 = sbr.rel (%p173) target = $region24
      $region23: #{discriminator_forward.2} parent=5 // pred_region
        // Predicated region
        $region25: #{discriminator_forward.2} parent=23 // pred_check
          %p176 = pneg %p43
        $region26: #{discriminator_forward.2} parent=23 // pred_check_branch
          %178 = sbr.rel (%p176) target = $region28
        $region27: #{discriminator_forward.2} parent=23 // pred_region
          %s179 = smul.u32 32, %s18
          %p180 = scmp.lt.s32.totalorder %s179, 63
          %s181 = scalar_select %p180, %s179, 63
          %s182 = smul.addr %s181, 4
          %s183 = scalar_lea.vmem %s0, %s182
          %s184 = smul.u32 32, %s18
        $region28: #{discriminator_forward.2} parent=23 // pred_fallthru
          _
      $region24: #{discriminator_forward.2} parent=5 // pred_fallthru
        _
      %p185 = scmp.le.s32.totalorder 1, %s11
      %p186 = scmp.lt.s32.totalorder %s11, 3
      %p187 = pnand %p185, %p186
      %p188 = pneg %p187
      // Predicated region
      $region29: #{discriminator_forward.2} parent=5 // pred_check
        _
      $region30: #{discriminator_forward.2} parent=5 // pred_check_branch
        %190 = sbr.rel (%p187) target = $region32
      $region31: #{discriminator_forward.2} parent=5 // pred_region
        %s191 = ssub.s32 %s11, 1
        // Predicated region
        $region33: #{discriminator_forward.2} parent=31 // pred_check
          %p192 = pneg %p75
        $region34: #{discriminator_forward.2} parent=31 // pred_check_branch
          %194 = sbr.rel (%p192) target = $region36
        $region35: #{discriminator_forward.2} parent=31 // pred_region
          %195 = dma.done [#allocation3], 128
        $region36: #{discriminator_forward.2} parent=31 // pred_fallthru
          _
        // Predicated region
        $region37: #{discriminator_forward.2} parent=31 // pred_check
          %p196 = pneg %p101
        $region38: #{discriminator_forward.2} parent=31 // pred_check_branch
          %198 = sbr.rel (%p196) target = $region40
        $region39: #{discriminator_forward.2} parent=31 // pred_region
          %199 = dma.done [#allocation5], 16
        $region40: #{discriminator_forward.2} parent=31 // pred_fallthru
          _
        %s200 = smul.u32 32, %s20
        %p201 = scmp.lt.s32.totalorder %s200, 63
        %s202 = scalar_select %p201, %s200, 63
        %s203 = smul.addr %s202, 4
        %s204 = scalar_lea.vmem %s0, %s203
        %p205 = pneg %p49
        %p206 = pneg %p46
        %p207 = pneg %p75
        %p208 = pneg %p72
        %p209 = pneg %p101
        %p210 = pneg %p98
        %p211 = pneg %p129
        %p212 = pneg %p126
        %s213 = smul.u32 32, %s20
        %p214 = scmp.lt.s32.totalorder %s213, 63
        %s215 = scalar_select %p214, %s213, 63
        %p216 = scmp.lt.s32.totalorder %s21, 0
        %s217 = scalar_select %p216, %s21, 0
        %s218 = sadd.s32 %s217, %s215
        %s219 = smul.addr %s218, 4
        %s220 = scalar_lea.vmem %s3, %s219
        %s221 = smul.u32 32, %s20
        %p222 = scmp.lt.s32.totalorder %s221, 63
        %s223 = scalar_select %p222, %s221, 63
        %s224 = smul.addr %s223, 4
        %s225 = scalar_lea.vmem %s0, %s224
        %s226 = smul.u32 32, %s20
        %s227 = smul.u32 32, %s20
        %p228 = scmp.lt.s32.totalorder %s227, 63
        %s229 = scalar_select %p228, %s227, 63
        %p230 = scmp.lt.s32.totalorder %s21, 0
        %s231 = scalar_select %p230, %s21, 0
        %s232 = sadd.s32 %s231, %s229
        %s233 = smul.addr %s232, 4
        %s234 = scalar_lea.vmem %s3, %s233
        %s235 = smul.u32 32, %s20
        %v237 = vld [vmem:[%s225] sm:$0xf]
        %v238 = vld [vmem:[%s225 + $0x4] sm:$0xf]
        %v239 = vld [vmem:[%s225 + $0x8] sm:$0xf]
        %v240 = vld [vmem:[%s225 + $0xc] sm:$0xf]
        %v241 = vld [vmem:[%s225 + $0x10] sm:$0xf]
        %v242 = vld [vmem:[%s225 + $0x14] sm:$0xf]
        %v243 = vld [vmem:[%s225 + $0x18] sm:$0xf]
        %v244 = vld [vmem:[%s225 + $0x1c] sm:$0xf]
        %v245 = vld [vmem:[%s225 + $0x20] sm:$0xf]
        %v246 = vld [vmem:[%s225 + $0x24] sm:$0xf]
        %v247 = vld [vmem:[%s225 + $0x28] sm:$0xf]
        %v248 = vld [vmem:[%s225 + $0x2c] sm:$0xf]
        %v249 = vld [vmem:[%s225 + $0x30] sm:$0xf]
        %v250 = vld [vmem:[%s225 + $0x34] sm:$0xf]
        %v251 = vld [vmem:[%s225 + $0x38] sm:$0xf]
        %v252 = vld [vmem:[%s225 + $0x3c] sm:$0xf]
        %v253 = vld [vmem:[%s225 + $0x40] sm:$0xf]
        %v254 = vld [vmem:[%s225 + $0x44] sm:$0xf]
        %v255 = vld [vmem:[%s225 + $0x48] sm:$0xf]
        %v256 = vld [vmem:[%s225 + $0x4c] sm:$0xf]
        %v257 = vld [vmem:[%s225 + $0x50] sm:$0xf]
        %v258 = vld [vmem:[%s225 + $0x54] sm:$0xf]
        %v259 = vld [vmem:[%s225 + $0x58] sm:$0xf]
        %v260 = vld [vmem:[%s225 + $0x5c] sm:$0xf]
        %v261 = vld [vmem:[%s225 + $0x60] sm:$0xf]
        %v262 = vld [vmem:[%s225 + $0x64] sm:$0xf]
        %v263 = vld [vmem:[%s225 + $0x68] sm:$0xf]
        %v264 = vld [vmem:[%s225 + $0x6c] sm:$0xf]
        %v265 = vld [vmem:[%s225 + $0x70] sm:$0xf]
        %v266 = vld [vmem:[%s225 + $0x74] sm:$0xf]
        %v267 = vld [vmem:[%s225 + $0x78] sm:$0xf]
        %v268 = vld [vmem:[%s225 + $0x7c] sm:$0xf]
        %v269 = vld [vmem:[#allocation2] sm:$0xf]
        %v270 = vld [vmem:[#allocation2 + $0x4] sm:$0x1]
        %v271 = vld [vmem:[#allocation4] sm:$0x1]
        %v273 = vlaneseq
        %v274 = vshrl.u32 %v273, 7
        %v275 = vsub.s32 0, %v274
        %v276 = vrot.slane %v271, %v275
        %v310 = vunpack.c.l.b16 %v237
        %v311 = vunpack.c.l.b16 %v238
        %v312 = vunpack.c.l.b16 %v239
        %v313 = vunpack.c.l.b16 %v240
        %v314 = vunpack.c.l.b16 %v241
        %v315 = vunpack.c.l.b16 %v242
        %v316 = vunpack.c.l.b16 %v243
        %v317 = vunpack.c.l.b16 %v244
        %v318 = vunpack.c.l.b16 %v245
        %v319 = vunpack.c.l.b16 %v246
        %v320 = vunpack.c.l.b16 %v247
        %v321 = vunpack.c.l.b16 %v248
        %v322 = vunpack.c.l.b16 %v249
        %v323 = vunpack.c.l.b16 %v250
        %v324 = vunpack.c.l.b16 %v251
        %v325 = vunpack.c.l.b16 %v252
        %v326 = vunpack.c.l.b16 %v253
        %v327 = vunpack.c.l.b16 %v254
        %v328 = vunpack.c.l.b16 %v255
        %v329 = vunpack.c.l.b16 %v256
        %v330 = vunpack.c.l.b16 %v257
        %v331 = vunpack.c.l.b16 %v258
        %v332 = vunpack.c.l.b16 %v259
        %v333 = vunpack.c.l.b16 %v260
        %v334 = vunpack.c.l.b16 %v261
        %v335 = vunpack.c.l.b16 %v262
        %v336 = vunpack.c.l.b16 %v263
        %v337 = vunpack.c.l.b16 %v264
        %v338 = vunpack.c.l.b16 %v265
        %v339 = vunpack.c.l.b16 %v266
        %v340 = vunpack.c.l.b16 %v267
        %v341 = vunpack.c.l.b16 %v268
        %v342 = vpack.c.b16 %v311, %v310
        %v343 = vpack.c.b16 %v313, %v312
        %v344 = vpack.c.b16 %v315, %v314
        %v345 = vpack.c.b16 %v317, %v316
        %v346 = vpack.c.b16 %v319, %v318
        %v347 = vpack.c.b16 %v321, %v320
        %v348 = vpack.c.b16 %v323, %v322
        %v349 = vpack.c.b16 %v325, %v324
        %v350 = vpack.c.b16 %v327, %v326
        %v351 = vpack.c.b16 %v329, %v328
        %v352 = vpack.c.b16 %v331, %v330
        %v353 = vpack.c.b16 %v333, %v332
        %v354 = vpack.c.b16 %v335, %v334
        %v355 = vpack.c.b16 %v337, %v336
        %v356 = vpack.c.b16 %v339, %v338
        %v357 = vpack.c.b16 %v341, %v340
        %v360 = vunpack.c.l.b16 %v269
        %v361 = vunpack.c.l.b16 %v270
        %v362 = vpack.c.b16 %v361, %v360
        %vm363 = vcmask 72704
        %v365 = vsel %vm363, %v342, 0
        %v368 = vsel %vm363, %v343, 0
        %v371 = vsel %vm363, %v344, 0
        %v374 = vsel %vm363, %v345, 0
        %v377 = vsel %vm363, %v346, 0
        %v380 = vsel %vm363, %v347, 0
        %v383 = vsel %vm363, %v348, 0
        %v386 = vsel %vm363, %v349, 0
        %v389 = vsel %vm363, %v350, 0
        %v392 = vsel %vm363, %v351, 0
        %v395 = vsel %vm363, %v352, 0
        %v398 = vsel %vm363, %v353, 0
        %v401 = vsel %vm363, %v354, 0
        %v404 = vsel %vm363, %v355, 0
        %v407 = vsel %vm363, %v356, 0
        %v410 = vsel %vm363, %v357, 0
        %vm412 = vcmask 1043456
        %vm413 = vcmask 1044480
        %v414 = vsel %vm412, 4294967295, 65535
        %v415 = vsel %vm413, %v414, 0
        %v417 = vand.u32 %v362, %v415
        %419 = vmatprep.subr.bf16.mxu0 0
        %420 = vmatpush1.bf16.msra.mxu0 %v417
        %421 = vmatprep.subr.bf16.mxu0 0
        %422 = vmatpush1.bf16.msra.mxu0 0
        %423 = vmatprep.subr.bf16.mxu0 0
        %424 = vmatpush1.bf16.msra.mxu0 0
        %425 = vmatprep.subr.bf16.mxu0 0
        %426 = vmatpush1.bf16.msra.mxu0 0
        %427 = vmatprep.subr.bf16.mxu0 0
        %428 = vmatpush1.bf16.msra.mxu0 0
        %429 = vmatprep.subr.bf16.mxu0 0
        %430 = vmatpush1.bf16.msra.mxu0 0
        %431 = vmatprep.subr.bf16.mxu0 0
        %432 = vmatpush1.bf16.msra.mxu0 0
        %433 = vmatprep.subr.bf16.mxu0 0
        %434 = vmatpush1.bf16.msra.mxu0 0
        %435 = vmatprep.subr.bf16.mxu0 0
        %436 = vmatpush1.bf16.msra.mxu0 0
        %437 = vmatprep.subr.bf16.mxu0 0
        %438 = vmatpush1.bf16.msra.mxu0 0
        %439 = vmatprep.subr.bf16.mxu0 0
        %440 = vmatpush1.bf16.msra.mxu0 0
        %441 = vmatprep.subr.bf16.mxu0 0
        %442 = vmatpush1.bf16.msra.mxu0 0
        %443 = vmatprep.subr.bf16.mxu0 0
        %444 = vmatpush1.bf16.msra.mxu0 0
        %445 = vmatprep.subr.bf16.mxu0 0
        %446 = vmatpush1.bf16.msra.mxu0 0
        %447 = vmatprep.subr.bf16.mxu0 0
        %448 = vmatpush1.bf16.msra.mxu0 0
        %449 = vmatprep.subr.bf16.mxu0 0
        %450 = vmatpush1.bf16.msra.mxu0 0
        %451 = vmatprep.mubr.bf16.mxu0 0
        %452 = vmatmul.mubr.bf16.gmra.mrb[0].mxu0 %v365
        %v453 = vpop.f32.mrb[0].mxu0
        %v454 = vadd.f32 %v276, %v453
        %v455 = vpop.f32.mrb[0].mxu0
        %v456 = vpop.f32.mrb[0].mxu0
        %v457 = vadd.f32 %v276, %v456
        %v458 = vpop.f32.mrb[0].mxu0
        %459 = vmatprep.mubr.bf16.mxu0 0
        %460 = vmatmul.mubr.bf16.gmra.mrb[0].mxu0 %v368
        %v461 = vpop.f32.mrb[0].mxu0
        %v462 = vadd.f32 %v276, %v461
        %v463 = vpop.f32.mrb[0].mxu0
        %v464 = vpop.f32.mrb[0].mxu0
        %v465 = vadd.f32 %v276, %v464
        %v466 = vpop.f32.mrb[0].mxu0
        %467 = vmatprep.mubr.bf16.mxu0 0
        %468 = vmatmul.mubr.bf16.gmra.mrb[0].mxu0 %v371
        %v469 = vpop.f32.mrb[0].mxu0
        %v470 = vadd.f32 %v276, %v469
        %v471 = vpop.f32.mrb[0].mxu0
        %v472 = vpop.f32.mrb[0].mxu0
        %v473 = vadd.f32 %v276, %v472
        %v474 = vpop.f32.mrb[0].mxu0
        %475 = vmatprep.mubr.bf16.mxu0 0
        %476 = vmatmul.mubr.bf16.gmra.mrb[0].mxu0 %v374
        %v477 = vpop.f32.mrb[0].mxu0
        %v478 = vadd.f32 %v276, %v477
        %v479 = vpop.f32.mrb[0].mxu0
        %v480 = vpop.f32.mrb[0].mxu0
        %v481 = vadd.f32 %v276, %v480
        %v482 = vpop.f32.mrb[0].mxu0
        %483 = vmatprep.mubr.bf16.mxu0 0
        %484 = vmatmul.mubr.bf16.gmra.mrb[0].mxu0 %v377
        %v485 = vpop.f32.mrb[0].mxu0
        %v486 = vadd.f32 %v276, %v485
        %v487 = vpop.f32.mrb[0].mxu0
        %v488 = vpop.f32.mrb[0].mxu0
        %v489 = vadd.f32 %v276, %v488
        %v490 = vpop.f32.mrb[0].mxu0
        %491 = vmatprep.mubr.bf16.mxu0 0
        %492 = vmatmul.mubr.bf16.gmra.mrb[0].mxu0 %v380
        %v493 = vpop.f32.mrb[0].mxu0
        %v494 = vadd.f32 %v276, %v493
        %v495 = vpop.f32.mrb[0].mxu0
        %v496 = vpop.f32.mrb[0].mxu0
        %v497 = vadd.f32 %v276, %v496
        %v498 = vpop.f32.mrb[0].mxu0
        %499 = vmatprep.mubr.bf16.mxu0 0
        %500 = vmatmul.mubr.bf16.gmra.mrb[0].mxu0 %v383
        %v501 = vpop.f32.mrb[0].mxu0
        %v502 = vadd.f32 %v276, %v501
        %v503 = vpop.f32.mrb[0].mxu0
        %v504 = vpop.f32.mrb[0].mxu0
        %v505 = vadd.f32 %v276, %v504
        %v506 = vpop.f32.mrb[0].mxu0
        %507 = vmatprep.mubr.bf16.mxu0 0
        %508 = vmatmul.mubr.bf16.gmra.mrb[0].mxu0 %v386
        %v509 = vpop.f32.mrb[0].mxu0
        %v510 = vadd.f32 %v276, %v509
        %v511 = vpop.f32.mrb[0].mxu0
        %v512 = vpop.f32.mrb[0].mxu0
        %v513 = vadd.f32 %v276, %v512
        %v514 = vpop.f32.mrb[0].mxu0
        %515 = vmatprep.mubr.bf16.mxu0 0
        %516 = vmatmul.mubr.bf16.gmra.mrb[0].mxu0 %v389
        %v517 = vpop.f32.mrb[0].mxu0
        %v518 = vadd.f32 %v276, %v517
        %v519 = vpop.f32.mrb[0].mxu0
        %v520 = vpop.f32.mrb[0].mxu0
        %v521 = vadd.f32 %v276, %v520
        %v522 = vpop.f32.mrb[0].mxu0
        %523 = vmatprep.mubr.bf16.mxu0 0
        %524 = vmatmul.mubr.bf16.gmra.mrb[0].mxu0 %v392
        %v525 = vpop.f32.mrb[0].mxu0
        %v526 = vadd.f32 %v276, %v525
        %v527 = vpop.f32.mrb[0].mxu0
        %v528 = vpop.f32.mrb[0].mxu0
        %v529 = vadd.f32 %v276, %v528
        %v530 = vpop.f32.mrb[0].mxu0
        %531 = vmatprep.mubr.bf16.mxu0 0
        %532 = vmatmul.mubr.bf16.gmra.mrb[0].mxu0 %v395
        %v533 = vpop.f32.mrb[0].mxu0
        %v534 = vadd.f32 %v276, %v533
        %v535 = vpop.f32.mrb[0].mxu0
        %v536 = vpop.f32.mrb[0].mxu0
        %v537 = vadd.f32 %v276, %v536
        %v538 = vpop.f32.mrb[0].mxu0
        %539 = vmatprep.mubr.bf16.mxu0 0
        %540 = vmatmul.mubr.bf16.gmra.mrb[0].mxu0 %v398
        %v541 = vpop.f32.mrb[0].mxu0
        %v542 = vadd.f32 %v276, %v541
        %v543 = vpop.f32.mrb[0].mxu0
        %v544 = vpop.f32.mrb[0].mxu0
        %v545 = vadd.f32 %v276, %v544
        %v546 = vpop.f32.mrb[0].mxu0
        %547 = vmatprep.mubr.bf16.mxu0 0
        %548 = vmatmul.mubr.bf16.gmra.mrb[0].mxu0 %v401
        %v549 = vpop.f32.mrb[0].mxu0
        %v550 = vadd.f32 %v276, %v549
        %v551 = vpop.f32.mrb[0].mxu0
        %v552 = vpop.f32.mrb[0].mxu0
        %v553 = vadd.f32 %v276, %v552
        %v554 = vpop.f32.mrb[0].mxu0
        %555 = vmatprep.mubr.bf16.mxu0 0
        %556 = vmatmul.mubr.bf16.gmra.mrb[0].mxu0 %v404
        %v557 = vpop.f32.mrb[0].mxu0
        %v558 = vadd.f32 %v276, %v557
        %v559 = vpop.f32.mrb[0].mxu0
        %v560 = vpop.f32.mrb[0].mxu0
        %v561 = vadd.f32 %v276, %v560
        %v562 = vpop.f32.mrb[0].mxu0
        %563 = vmatprep.mubr.bf16.mxu0 0
        %564 = vmatmul.mubr.bf16.gmra.mrb[0].mxu0 %v407
        %v565 = vpop.f32.mrb[0].mxu0
        %v566 = vadd.f32 %v276, %v565
        %v567 = vpop.f32.mrb[0].mxu0
        %v568 = vpop.f32.mrb[0].mxu0
        %v569 = vadd.f32 %v276, %v568
        %v570 = vpop.f32.mrb[0].mxu0
        %571 = vmatprep.mubr.bf16.mxu0 0
        %572 = vmatmul.mubr.bf16.gmra.mrb[0].mxu0 %v410
        %v573 = vpop.f32.mrb[0].mxu0
        %v574 = vadd.f32 %v276, %v573
        %v575 = vpop.f32.mrb[0].mxu0
        %v576 = vpop.f32.mrb[0].mxu0
        %v577 = vadd.f32 %v276, %v576
        %v578 = vpop.f32.mrb[0].mxu0
        %579 = vdwg.mxu0
        %v580 = vmul.f32 %v454, 0.2
        %v581 = vmul.f32 %v457, 0.2
        %v582 = vmul.f32 %v462, 0.2
        %v583 = vmul.f32 %v465, 0.2
        %v584 = vmul.f32 %v470, 0.2
        %v585 = vmul.f32 %v473, 0.2
        %v586 = vmul.f32 %v478, 0.2
        %v587 = vmul.f32 %v481, 0.2
        %v588 = vmul.f32 %v486, 0.2
        %v589 = vmul.f32 %v489, 0.2
        %v590 = vmul.f32 %v494, 0.2
        %v591 = vmul.f32 %v497, 0.2
        %v592 = vmul.f32 %v502, 0.2
        %v593 = vmul.f32 %v505, 0.2
        %v594 = vmul.f32 %v510, 0.2
        %v595 = vmul.f32 %v513, 0.2
        %v596 = vmul.f32 %v518, 0.2
        %v597 = vmul.f32 %v521, 0.2
        %v598 = vmul.f32 %v526, 0.2
        %v599 = vmul.f32 %v529, 0.2
        %v600 = vmul.f32 %v534, 0.2
        %v601 = vmul.f32 %v537, 0.2
        %v602 = vmul.f32 %v542, 0.2
        %v603 = vmul.f32 %v545, 0.2
        %v604 = vmul.f32 %v550, 0.2
        %v605 = vmul.f32 %v553, 0.2
        %v606 = vmul.f32 %v558, 0.2
        %v607 = vmul.f32 %v561, 0.2
        %v608 = vmul.f32 %v566, 0.2
        %v609 = vmul.f32 %v569, 0.2
        %v610 = vmul.f32 %v574, 0.2
        %v611 = vmul.f32 %v577, 0.2
        %v612 = vmax.f32 %v454, %v580
        %v613 = vmax.f32 %v457, %v581
        %v614 = vmax.f32 %v462, %v582
        %v615 = vmax.f32 %v465, %v583
        %v616 = vmax.f32 %v470, %v584
        %v617 = vmax.f32 %v473, %v585
        %v618 = vmax.f32 %v478, %v586
        %v619 = vmax.f32 %v481, %v587
        %v620 = vmax.f32 %v486, %v588
        %v621 = vmax.f32 %v489, %v589
        %v622 = vmax.f32 %v494, %v590
        %v623 = vmax.f32 %v497, %v591
        %v624 = vmax.f32 %v502, %v592
        %v625 = vmax.f32 %v505, %v593
        %v626 = vmax.f32 %v510, %v594
        %v627 = vmax.f32 %v513, %v595
        %v628 = vmax.f32 %v518, %v596
        %v629 = vmax.f32 %v521, %v597
        %v630 = vmax.f32 %v526, %v598
        %v631 = vmax.f32 %v529, %v599
        %v632 = vmax.f32 %v534, %v600
        %v633 = vmax.f32 %v537, %v601
        %v634 = vmax.f32 %v542, %v602
        %v635 = vmax.f32 %v545, %v603
        %v636 = vmax.f32 %v550, %v604
        %v637 = vmax.f32 %v553, %v605
        %v638 = vmax.f32 %v558, %v606
        %v639 = vmax.f32 %v561, %v607
        %v640 = vmax.f32 %v566, %v608
        %v641 = vmax.f32 %v569, %v609
        %v642 = vmax.f32 %v574, %v610
        %v643 = vmax.f32 %v577, %v611
        %v644 = vpack.c.bf16 %v613, %v612
        %v645 = vpack.c.bf16 %v615, %v614
        %v646 = vpack.c.bf16 %v617, %v616
        %v647 = vpack.c.bf16 %v619, %v618
        %v648 = vpack.c.bf16 %v621, %v620
        %v649 = vpack.c.bf16 %v623, %v622
        %v650 = vpack.c.bf16 %v625, %v624
        %v651 = vpack.c.bf16 %v627, %v626
        %v652 = vpack.c.bf16 %v629, %v628
        %v653 = vpack.c.bf16 %v631, %v630
        %v654 = vpack.c.bf16 %v633, %v632
        %v655 = vpack.c.bf16 %v635, %v634
        %v656 = vpack.c.bf16 %v637, %v636
        %v657 = vpack.c.bf16 %v639, %v638
        %v658 = vpack.c.bf16 %v641, %v640
        %v659 = vpack.c.bf16 %v643, %v642
        %v676 = vunpack.c.l.b16 %v644
        %v677 = vunpack.c.h.b16 %v644
        %v678 = vunpack.c.l.b16 %v645
        %v679 = vunpack.c.h.b16 %v645
        %v680 = vunpack.c.l.b16 %v646
        %v681 = vunpack.c.h.b16 %v646
        %v682 = vunpack.c.l.b16 %v647
        %v683 = vunpack.c.h.b16 %v647
        %v684 = vunpack.c.l.b16 %v648
        %v685 = vunpack.c.h.b16 %v648
        %v686 = vunpack.c.l.b16 %v649
        %v687 = vunpack.c.h.b16 %v649
        %v688 = vunpack.c.l.b16 %v650
        %v689 = vunpack.c.h.b16 %v650
        %v690 = vunpack.c.l.b16 %v651
        %v691 = vunpack.c.h.b16 %v651
        %v692 = vunpack.c.l.b16 %v652
        %v693 = vunpack.c.h.b16 %v652
        %v694 = vunpack.c.l.b16 %v653
        %v695 = vunpack.c.h.b16 %v653
        %v696 = vunpack.c.l.b16 %v654
        %v697 = vunpack.c.h.b16 %v654
        %v698 = vunpack.c.l.b16 %v655
        %v699 = vunpack.c.h.b16 %v655
        %v700 = vunpack.c.l.b16 %v656
        %v701 = vunpack.c.h.b16 %v656
        %v702 = vunpack.c.l.b16 %v657
        %v703 = vunpack.c.h.b16 %v657
        %v704 = vunpack.c.l.b16 %v658
        %v705 = vunpack.c.h.b16 %v658
        %v706 = vunpack.c.l.b16 %v659
        %v707 = vunpack.c.h.b16 %v659
        %v708 = vpack.c.b16 %v676, %v676
        %v709 = vpack.c.b16 %v677, %v677
        %v710 = vpack.c.b16 %v678, %v678
        %v711 = vpack.c.b16 %v679, %v679
        %v712 = vpack.c.b16 %v680, %v680
        %v713 = vpack.c.b16 %v681, %v681
        %v714 = vpack.c.b16 %v682, %v682
        %v715 = vpack.c.b16 %v683, %v683
        %v716 = vpack.c.b16 %v684, %v684
        %v717 = vpack.c.b16 %v685, %v685
        %v718 = vpack.c.b16 %v686, %v686
        %v719 = vpack.c.b16 %v687, %v687
        %v720 = vpack.c.b16 %v688, %v688
        %v721 = vpack.c.b16 %v689, %v689
        %v722 = vpack.c.b16 %v690, %v690
        %v723 = vpack.c.b16 %v691, %v691
        %v724 = vpack.c.b16 %v692, %v692
        %v725 = vpack.c.b16 %v693, %v693
        %v726 = vpack.c.b16 %v694, %v694
        %v727 = vpack.c.b16 %v695, %v695
        %v728 = vpack.c.b16 %v696, %v696
        %v729 = vpack.c.b16 %v697, %v697
        %v730 = vpack.c.b16 %v698, %v698
        %v731 = vpack.c.b16 %v699, %v699
        %v732 = vpack.c.b16 %v700, %v700
        %v733 = vpack.c.b16 %v701, %v701
        %v734 = vpack.c.b16 %v702, %v702
        %v735 = vpack.c.b16 %v703, %v703
        %v736 = vpack.c.b16 %v704, %v704
        %v737 = vpack.c.b16 %v705, %v705
        %v738 = vpack.c.b16 %v706, %v706
        %v739 = vpack.c.b16 %v707, %v707
        %vm772 = vcmask 519168
        %773 = vst.msk [vmem:[%s234] sm:$0xf] %vm772, %v708
        %774 = vst.msk [vmem:[%s234 + $0x4] sm:$0xf] %vm772, %v709
        %775 = vst.msk [vmem:[%s234 + $0x8] sm:$0xf] %vm772, %v710
        %776 = vst.msk [vmem:[%s234 + $0xc] sm:$0xf] %vm772, %v711
        %777 = vst.msk [vmem:[%s234 + $0x10] sm:$0xf] %vm772, %v712
        %778 = vst.msk [vmem:[%s234 + $0x14] sm:$0xf] %vm772, %v713
        %779 = vst.msk [vmem:[%s234 + $0x18] sm:$0xf] %vm772, %v714
        %780 = vst.msk [vmem:[%s234 + $0x1c] sm:$0xf] %vm772, %v715
        %781 = vst.msk [vmem:[%s234 + $0x20] sm:$0xf] %vm772, %v716
        %782 = vst.msk [vmem:[%s234 + $0x24] sm:$0xf] %vm772, %v717
        %783 = vst.msk [vmem:[%s234 + $0x28] sm:$0xf] %vm772, %v718
        %784 = vst.msk [vmem:[%s234 + $0x2c] sm:$0xf] %vm772, %v719
        %785 = vst.msk [vmem:[%s234 + $0x30] sm:$0xf] %vm772, %v720
        %786 = vst.msk [vmem:[%s234 + $0x34] sm:$0xf] %vm772, %v721
        %787 = vst.msk [vmem:[%s234 + $0x38] sm:$0xf] %vm772, %v722
        %788 = vst.msk [vmem:[%s234 + $0x3c] sm:$0xf] %vm772, %v723
        %789 = vst.msk [vmem:[%s234 + $0x40] sm:$0xf] %vm772, %v724
        %790 = vst.msk [vmem:[%s234 + $0x44] sm:$0xf] %vm772, %v725
        %791 = vst.msk [vmem:[%s234 + $0x48] sm:$0xf] %vm772, %v726
        %792 = vst.msk [vmem:[%s234 + $0x4c] sm:$0xf] %vm772, %v727
        %793 = vst.msk [vmem:[%s234 + $0x50] sm:$0xf] %vm772, %v728
        %794 = vst.msk [vmem:[%s234 + $0x54] sm:$0xf] %vm772, %v729
        %795 = vst.msk [vmem:[%s234 + $0x58] sm:$0xf] %vm772, %v730
        %796 = vst.msk [vmem:[%s234 + $0x5c] sm:$0xf] %vm772, %v731
        %797 = vst.msk [vmem:[%s234 + $0x60] sm:$0xf] %vm772, %v732
        %798 = vst.msk [vmem:[%s234 + $0x64] sm:$0xf] %vm772, %v733
        %799 = vst.msk [vmem:[%s234 + $0x68] sm:$0xf] %vm772, %v734
        %800 = vst.msk [vmem:[%s234 + $0x6c] sm:$0xf] %vm772, %v735
        %801 = vst.msk [vmem:[%s234 + $0x70] sm:$0xf] %vm772, %v736
        %802 = vst.msk [vmem:[%s234 + $0x74] sm:$0xf] %vm772, %v737
        %803 = vst.msk [vmem:[%s234 + $0x78] sm:$0xf] %vm772, %v738
        %804 = vst.msk [vmem:[%s234 + $0x7c] sm:$0xf] %vm772, %v739
        %s805 = smul.u32 32, %s20
        %p806 = scmp.lt.s32.totalorder %s805, 63
        %s807 = scalar_select %p806, %s805, 63
        %p808 = scmp.lt.s32.totalorder %s21, 0
        %s809 = scalar_select %p808, %s21, 0
        %s810 = sadd.s32 %s809, %s807
        %s811 = smul.addr %s810, 4
        %s812 = scalar_lea.vmem %s3, %s811
        // Predicated region
        $region41: #{discriminator_forward.2} parent=31 // pred_check
          %p813 = pneg %p126
        $region42: #{discriminator_forward.2} parent=31 // pred_check_branch
          %815 = sbr.rel (%p813) target = $region44
        $region43: #{discriminator_forward.2} parent=31 // pred_region
          %s816 = smul.u32 32, %s20
        $region44: #{discriminator_forward.2} parent=31 // pred_fallthru
          _
      $region32: #{discriminator_forward.2} parent=5 // pred_fallthru
        _
      %p817 = scmp.le.s32.totalorder 2, %s11
      // Predicated region
      $region45: #{discriminator_forward.2} parent=5 // pred_check
        %p818 = pneg %p817
      $region46: #{discriminator_forward.2} parent=5 // pred_check_branch
        %820 = sbr.rel (%p818) target = $region48
      $region47: #{discriminator_forward.2} parent=5 // pred_region
        %s821 = ssub.s32 %s11, 2
        // Predicated region
        $region49: #{discriminator_forward.2} parent=47 // pred_check
          %p822 = pneg %p132
        $region50: #{discriminator_forward.2} parent=47 // pred_check_branch
          %824 = sbr.rel (%p822) target = $region52
        $region51: #{discriminator_forward.2} parent=47 // pred_region
          %s825 = smul.u32 32, %s22
          %p826 = scmp.lt.s32.totalorder %s825, 63
          %s827 = scalar_select %p826, %s825, 63
          %p828 = scmp.lt.s32.totalorder %s23, 0
          %s829 = scalar_select %p828, %s23, 0
          %s830 = sadd.s32 %s829, %s827
          %s831 = smul.addr %s830, 4
          %s832 = scalar_lea.vmem %s3, %s831
        $region52: #{discriminator_forward.2} parent=47 // pred_fallthru
          _
      $region48: #{discriminator_forward.2} parent=5 // pred_fallthru
        _
    $region6: #{discriminator_forward.2} parent=1 // loop_footer
      %s15 = sadd.s32 1, %s11
    $region7: #{discriminator_forward.2} parent=1 // loop_footer_branch
      %10 = sbr.rel target = $region3
    $region8: #{discriminator_forward.2} parent=1 // loop_exit
      _
    %833 = vsyncpa [#allocation3], 1
    %s834 = scalar_lea.sflag [#allocation3], 1
    %835 = vsyncpa %s834, 1
    %836 = vsyncpa [#allocation5], 1

// kernel: discriminator_forward.3
$region0: #{discriminator_forward.3}
  #allocation0 [shape = 'u32[]', space=smem, size = 0x4, offset = 0x4, fixed_abs, tag = 'smem constant byte address 0x4 - core index']
  #allocation1 [shape = 'u32[144,128]{1,0:T(1,128)}', space=vmem, size = 0x12000, scoped, tag = 'internal scratch']
  %s0 = inlined_call_operand.vmem [shape: bf16[128,576], index: 0, kind: input, shape index: {}]
  %s1 = inlined_call_operand.vmem [shape: bf16[576,128], index: 1, kind: input, shape index: {}]
  %s2 = inlined_call_operand.vmem [shape: f32[1,128], index: 2, kind: input, shape index: {}]
  %s3 = inlined_call_operand.vmem [shape: bf16[128,128], index: 3, kind: output, shape index: {}]
  %s4 = sld [smem:[#allocation0]]
  $region22: #{discriminator_forward.3} parent=0
    _
  %s6 = ssub.s32 1, %s4
  %s7 = scalar_select 0, %s6, %s4
  // Predicated region
  $region2: #{discriminator_forward.3} parent=0 // pred_check
    _
  $region3: #{discriminator_forward.3} parent=0 // pred_check_branch
    %9 = sbr.rel (0) target = $region5
  $region4: #{discriminator_forward.3} parent=0 // pred_region
    _
  $region5: #{discriminator_forward.3} parent=0 // pred_fallthru
    _
  // Predicated region
  $region6: #{discriminator_forward.3} parent=0 // pred_check
    _
  $region7: #{discriminator_forward.3} parent=0 // pred_check_branch
    %11 = sbr.rel (0) target = $region9
  $region8: #{discriminator_forward.3} parent=0 // pred_region
    _
  $region9: #{discriminator_forward.3} parent=0 // pred_fallthru
    _
  // Predicated region
  $region10: #{discriminator_forward.3} parent=0 // pred_check
    _
  $region11: #{discriminator_forward.3} parent=0 // pred_check_branch
    %13 = sbr.rel (0) target = $region13
  $region12: #{discriminator_forward.3} parent=0 // pred_region
    _
  $region13: #{discriminator_forward.3} parent=0 // pred_fallthru
    _
  %v15 = vld [vmem:[%s0] sm:$0xff]
  %v16 = vld [vmem:[%s0 + $0x8] sm:$0xff]
  %v17 = vld [vmem:[%s0 + $0x10] sm:$0xf]
  %v18 = vld [vmem:[%s0 + $0x14] sm:$0xff]
  %v19 = vld [vmem:[%s0 + $0x1c] sm:$0xff]
  %v20 = vld [vmem:[%s0 + $0x24] sm:$0xf]
  %v21 = vld [vmem:[%s0 + $0x28] sm:$0xff]
  %v22 = vld [vmem:[%s0 + $0x30] sm:$0xff]
  %v23 = vld [vmem:[%s0 + $0x38] sm:$0xf]
  %v24 = vld [vmem:[%s0 + $0x3c] sm:$0xff]
  %v25 = vld [vmem:[%s0 + $0x44] sm:$0xff]
  %v26 = vld [vmem:[%s0 + $0x4c] sm:$0xf]
  %v27 = vld [vmem:[%s0 + $0x50] sm:$0xff]
  %v28 = vld [vmem:[%s0 + $0x58] sm:$0xff]
  %v29 = vld [vmem:[%s0 + $0x60] sm:$0xf]
  %v30 = vld [vmem:[%s0 + $0x64] sm:$0xff]
  %v31 = vld [vmem:[%s0 + $0x6c] sm:$0xff]
  %v32 = vld [vmem:[%s0 + $0x74] sm:$0xf]
  %v33 = vld [vmem:[%s0 + $0x78] sm:$0xff]
  %v34 = vld [vmem:[%s0 + $0x80] sm:$0xff]
  %v35 = vld [vmem:[%s0 + $0x88] sm:$0xf]
  %v36 = vld [vmem:[%s0 + $0x8c] sm:$0xff]
  %v37 = vld [vmem:[%s0 + $0x94] sm:$0xff]
  %v38 = vld [vmem:[%s0 + $0x9c] sm:$0xf]
  %v39 = vld [vmem:[%s0 + $0xa0] sm:$0xff]
  %v40 = vld [vmem:[%s0 + $0xa8] sm:$0xff]
  %v41 = vld [vmem:[%s0 + $0xb0] sm:$0xf]
  %v42 = vld [vmem:[%s0 + $0xb4] sm:$0xff]
  %v43 = vld [vmem:[%s0 + $0xbc] sm:$0xff]
  %v44 = vld [vmem:[%s0 + $0xc4] sm:$0xf]
  %v45 = vld [vmem:[%s0 + $0xc8] sm:$0xff]
  %v46 = vld [vmem:[%s0 + $0xd0] sm:$0xff]
  %v47 = vld [vmem:[%s0 + $0xd8] sm:$0xf]
  %v48 = vld [vmem:[%s0 + $0xdc] sm:$0xff]
  %v49 = vld [vmem:[%s0 + $0xe4] sm:$0xff]
  %v50 = vld [vmem:[%s0 + $0xec] sm:$0xf]
  %v51 = vld [vmem:[%s0 + $0xf0] sm:$0xff]
  %v52 = vld [vmem:[%s0 + $0xf8] sm:$0xff]
  %v53 = vld [vmem:[%s0 + $0x100] sm:$0xf]
  %v54 = vld [vmem:[%s0 + $0x104] sm:$0xff]
  %v55 = vld [vmem:[%s0 + $0x10c] sm:$0xff]
  %v56 = vld [vmem:[%s0 + $0x114] sm:$0xf]
  %v57 = vld [vmem:[%s0 + $0x118] sm:$0xff]
  %v58 = vld [vmem:[%s0 + $0x120] sm:$0xff]
  %v59 = vld [vmem:[%s0 + $0x128] sm:$0xf]
  %v60 = vld [vmem:[%s0 + $0x12c] sm:$0xff]
  %v61 = vld [vmem:[%s0 + $0x134] sm:$0xff]
  %v62 = vld [vmem:[%s0 + $0x13c] sm:$0xf]
  %v63 = vld [vmem:[%s1] sm:$0xf]
  %v64 = vld [vmem:[%s1 + $0x4] sm:$0xf]
  %v65 = vld [vmem:[%s1 + $0x8] sm:$0xf]
  %v66 = vld [vmem:[%s1 + $0xc] sm:$0xf]
  %v67 = vld [vmem:[%s1 + $0x10] sm:$0xf]
  %v68 = vld [vmem:[%s1 + $0x14] sm:$0xf]
  %v69 = vld [vmem:[%s1 + $0x18] sm:$0xf]
  %v70 = vld [vmem:[%s1 + $0x1c] sm:$0xf]
  %v71 = vld [vmem:[%s1 + $0x20] sm:$0xf]
  %v72 = vld [vmem:[%s1 + $0x24] sm:$0xf]
  %v73 = vld [vmem:[%s1 + $0x28] sm:$0xf]
  %v74 = vld [vmem:[%s1 + $0x2c] sm:$0xf]
  %v75 = vld [vmem:[%s1 + $0x30] sm:$0xf]
  %v76 = vld [vmem:[%s1 + $0x34] sm:$0xf]
  %v77 = vld [vmem:[%s1 + $0x38] sm:$0xf]
  %v78 = vld [vmem:[%s1 + $0x3c] sm:$0xf]
  %v79 = vld [vmem:[%s1 + $0x40] sm:$0xf]
  %v80 = vld [vmem:[%s1 + $0x44] sm:$0xf]
  %v81 = vld [vmem:[%s1 + $0x48] sm:$0xf]
  %v82 = vld [vmem:[%s1 + $0x4c] sm:$0xf]
  %v83 = vld [vmem:[%s1 + $0x50] sm:$0xf]
  %v84 = vld [vmem:[%s1 + $0x54] sm:$0xf]
  %v85 = vld [vmem:[%s1 + $0x58] sm:$0xf]
  %v86 = vld [vmem:[%s1 + $0x5c] sm:$0xf]
  %v87 = vld [vmem:[%s1 + $0x60] sm:$0xf]
  %v88 = vld [vmem:[%s1 + $0x64] sm:$0xf]
  %v89 = vld [vmem:[%s1 + $0x68] sm:$0xf]
  %v90 = vld [vmem:[%s1 + $0x6c] sm:$0xf]
  %v91 = vld [vmem:[%s1 + $0x70] sm:$0xf]
  %v92 = vld [vmem:[%s1 + $0x74] sm:$0xf]
  %v93 = vld [vmem:[%s1 + $0x78] sm:$0xf]
  %v94 = vld [vmem:[%s1 + $0x7c] sm:$0xf]
  %v95 = vld [vmem:[%s1 + $0x80] sm:$0xf]
  %v96 = vld [vmem:[%s1 + $0x84] sm:$0xf]
  %v97 = vld [vmem:[%s1 + $0x88] sm:$0xf]
  %v98 = vld [vmem:[%s1 + $0x8c] sm:$0xf]
  %v99 = vld [vmem:[%s1 + $0x90] sm:$0xf]
  %v100 = vld [vmem:[%s1 + $0x94] sm:$0xf]
  %v101 = vld [vmem:[%s1 + $0x98] sm:$0xf]
  %v102 = vld [vmem:[%s1 + $0x9c] sm:$0xf]
  %v103 = vld [vmem:[%s1 + $0xa0] sm:$0xf]
  %v104 = vld [vmem:[%s1 + $0xa4] sm:$0xf]
  %v105 = vld [vmem:[%s1 + $0xa8] sm:$0xf]
  %v106 = vld [vmem:[%s1 + $0xac] sm:$0xf]
  %v107 = vld [vmem:[%s1 + $0xb0] sm:$0xf]
  %v108 = vld [vmem:[%s1 + $0xb4] sm:$0xf]
  %v109 = vld [vmem:[%s1 + $0xb8] sm:$0xf]
  %v110 = vld [vmem:[%s1 + $0xbc] sm:$0xf]
  %v111 = vld [vmem:[%s1 + $0xc0] sm:$0xf]
  %v112 = vld [vmem:[%s1 + $0xc4] sm:$0xf]
  %v113 = vld [vmem:[%s1 + $0xc8] sm:$0xf]
  %v114 = vld [vmem:[%s1 + $0xcc] sm:$0xf]
  %v115 = vld [vmem:[%s1 + $0xd0] sm:$0xf]
  %v116 = vld [vmem:[%s1 + $0xd4] sm:$0xf]
  %v117 = vld [vmem:[%s1 + $0xd8] sm:$0xf]
  %v118 = vld [vmem:[%s1 + $0xdc] sm:$0xf]
  %v119 = vld [vmem:[%s1 + $0xe0] sm:$0xf]
  %v120 = vld [vmem:[%s1 + $0xe4] sm:$0xf]
  %v121 = vld [vmem:[%s1 + $0xe8] sm:$0xf]
  %v122 = vld [vmem:[%s1 + $0xec] sm:$0xf]
  %v123 = vld [vmem:[%s1 + $0xf0] sm:$0xf]
  %v124 = vld [vmem:[%s1 + $0xf4] sm:$0xf]
  %v125 = vld [vmem:[%s1 + $0xf8] sm:$0xf]
  %v126 = vld [vmem:[%s1 + $0xfc] sm:$0xf]
  %v127 = vld [vmem:[%s1 + $0x100] sm:$0xf]
  %v128 = vld [vmem:[%s1 + $0x104] sm:$0xf]
  %v129 = vld [vmem:[%s1 + $0x108] sm:$0xf]
  %v130 = vld [vmem:[%s1 + $0x10c] sm:$0xf]
  %v131 = vld [vmem:[%s1 + $0x110] sm:$0xf]
  %v132 = vld [vmem:[%s1 + $0x114] sm:$0xf]
  %v133 = vld [vmem:[%s1 + $0x118] sm:$0xf]
  %v134 = vld [vmem:[%s1 + $0x11c] sm:$0xf]
  %v135 = vld [vmem:[%s2] sm:$0x1]
  %v137 = vlaneseq
  %v138 = vshrl.u32 %v137, 7
  %v139 = vsub.s32 0, %v138
  %v140 = vrot.slane %v135, %v139
  %v190 = vunpack.c.l.b16 %v15
  %v191 = vunpack.c.h.b16 %v15
  %v192 = vunpack.c.l.b16 %v16
  %v193 = vunpack.c.h.b16 %v16
  %v194 = vunpack.c.l.b16 %v17
  %v195 = vunpack.c.l.b16 %v18
  %v196 = vunpack.c.h.b16 %v18
  %v197 = vunpack.c.l.b16 %v19
  %v198 = vunpack.c.h.b16 %v19
  %v199 = vunpack.c.l.b16 %v20
  %v200 = vunpack.c.l.b16 %v21
  %v201 = vunpack.c.h.b16 %v21
  %v202 = vunpack.c.l.b16 %v22
  %v203 = vunpack.c.h.b16 %v22
  %v204 = vunpack.c.l.b16 %v23
  %v205 = vunpack.c.l.b16 %v24
  %v206 = vunpack.c.h.b16 %v24
  %v207 = vunpack.c.l.b16 %v25
  %v208 = vunpack.c.h.b16 %v25
  %v209 = vunpack.c.l.b16 %v26
  %v210 = vunpack.c.l.b16 %v27
  %v211 = vunpack.c.h.b16 %v27
  %v212 = vunpack.c.l.b16 %v28
  %v213 = vunpack.c.h.b16 %v28
  %v214 = vunpack.c.l.b16 %v29
  %v215 = vunpack.c.l.b16 %v30
  %v216 = vunpack.c.h.b16 %v30
  %v217 = vunpack.c.l.b16 %v31
  %v218 = vunpack.c.h.b16 %v31
  %v219 = vunpack.c.l.b16 %v32
  %v220 = vunpack.c.l.b16 %v33
  %v221 = vunpack.c.h.b16 %v33
  %v222 = vunpack.c.l.b16 %v34
  %v223 = vunpack.c.h.b16 %v34
  %v224 = vunpack.c.l.b16 %v35
  %v225 = vunpack.c.l.b16 %v36
  %v226 = vunpack.c.h.b16 %v36
  %v227 = vunpack.c.l.b16 %v37
  %v228 = vunpack.c.h.b16 %v37
  %v229 = vunpack.c.l.b16 %v38
  %v230 = vunpack.c.l.b16 %v39
  %v231 = vunpack.c.h.b16 %v39
  %v232 = vunpack.c.l.b16 %v40
  %v233 = vunpack.c.h.b16 %v40
  %v234 = vunpack.c.l.b16 %v41
  %v235 = vunpack.c.l.b16 %v42
  %v236 = vunpack.c.h.b16 %v42
  %v237 = vunpack.c.l.b16 %v43
  %v238 = vunpack.c.h.b16 %v43
  %v239 = vunpack.c.l.b16 %v44
  %v240 = vunpack.c.l.b16 %v45
  %v241 = vunpack.c.h.b16 %v45
  %v242 = vunpack.c.l.b16 %v46
  %v243 = vunpack.c.h.b16 %v46
  %v244 = vunpack.c.l.b16 %v47
  %v245 = vunpack.c.l.b16 %v48
  %v246 = vunpack.c.h.b16 %v48
  %v247 = vunpack.c.l.b16 %v49
  %v248 = vunpack.c.h.b16 %v49
  %v249 = vunpack.c.l.b16 %v50
  %v250 = vunpack.c.l.b16 %v51
  %v251 = vunpack.c.h.b16 %v51
  %v252 = vunpack.c.l.b16 %v52
  %v253 = vunpack.c.h.b16 %v52
  %v254 = vunpack.c.l.b16 %v53
  %v255 = vunpack.c.l.b16 %v54
  %v256 = vunpack.c.h.b16 %v54
  %v257 = vunpack.c.l.b16 %v55
  %v258 = vunpack.c.h.b16 %v55
  %v259 = vunpack.c.l.b16 %v56
  %v260 = vunpack.c.l.b16 %v57
  %v261 = vunpack.c.h.b16 %v57
  %v262 = vunpack.c.l.b16 %v58
  %v263 = vunpack.c.h.b16 %v58
  %v264 = vunpack.c.l.b16 %v59
  %v265 = vunpack.c.l.b16 %v60
  %v266 = vunpack.c.h.b16 %v60
  %v267 = vunpack.c.l.b16 %v61
  %v268 = vunpack.c.h.b16 %v61
  %v269 = vunpack.c.l.b16 %v62
  %v270 = vpack.c.b16 %v195, %v190
  %v271 = vpack.c.b16 %v196, %v191
  %v272 = vpack.c.b16 %v197, %v192
  %v273 = vpack.c.b16 %v198, %v193
  %v274 = vpack.c.b16 %v199, %v194
  %v275 = vpack.c.b16 %v205, %v200
  %v276 = vpack.c.b16 %v206, %v201
  %v277 = vpack.c.b16 %v207, %v202
  %v278 = vpack.c.b16 %v208, %v203
  %v279 = vpack.c.b16 %v209, %v204
  %v280 = vpack.c.b16 %v215, %v210
  %v281 = vpack.c.b16 %v216, %v211
  %v282 = vpack.c.b16 %v217, %v212
  %v283 = vpack.c.b16 %v218, %v213
  %v284 = vpack.c.b16 %v219, %v214
  %v285 = vpack.c.b16 %v225, %v220
  %v286 = vpack.c.b16 %v226, %v221
  %v287 = vpack.c.b16 %v227, %v222
  %v288 = vpack.c.b16 %v228, %v223
  %v289 = vpack.c.b16 %v229, %v224
  %v290 = vpack.c.b16 %v235, %v230
  %v291 = vpack.c.b16 %v236, %v231
  %v292 = vpack.c.b16 %v237, %v232
  %v293 = vpack.c.b16 %v238, %v233
  %v294 = vpack.c.b16 %v239, %v234
  %v295 = vpack.c.b16 %v245, %v240
  %v296 = vpack.c.b16 %v246, %v241
  %v297 = vpack.c.b16 %v247, %v242
  %v298 = vpack.c.b16 %v248, %v243
  %v299 = vpack.c.b16 %v249, %v244
  %v300 = vpack.c.b16 %v255, %v250
  %v301 = vpack.c.b16 %v256, %v251
  %v302 = vpack.c.b16 %v257, %v252
  %v303 = vpack.c.b16 %v258, %v253
  %v304 = vpack.c.b16 %v259, %v254
  %v305 = vpack.c.b16 %v265, %v260
  %v306 = vpack.c.b16 %v266, %v261
  %v307 = vpack.c.b16 %v267, %v262
  %v308 = vpack.c.b16 %v268, %v263
  %v309 = vpack.c.b16 %v269, %v264
  %v414 = vunpack.c.l.b16 %v63
  %v415 = vunpack.c.l.b16 %v64
  %v416 = vunpack.c.l.b16 %v65
  %v417 = vunpack.c.l.b16 %v66
  %v418 = vunpack.c.l.b16 %v67
  %v419 = vunpack.c.l.b16 %v68
  %v420 = vunpack.c.l.b16 %v69
  %v421 = vunpack.c.l.b16 %v70
  %v422 = vunpack.c.l.b16 %v71
  %v423 = vunpack.c.l.b16 %v72
  %v424 = vunpack.c.l.b16 %v73
  %v425 = vunpack.c.l.b16 %v74
  %v426 = vunpack.c.l.b16 %v75
  %v427 = vunpack.c.l.b16 %v76
  %v428 = vunpack.c.l.b16 %v77
  %v429 = vunpack.c.l.b16 %v78
  %v430 = vunpack.c.l.b16 %v79
  %v431 = vunpack.c.l.b16 %v80
  %v432 = vunpack.c.l.b16 %v81
  %v433 = vunpack.c.l.b16 %v82
  %v434 = vunpack.c.l.b16 %v83
  %v435 = vunpack.c.l.b16 %v84
  %v436 = vunpack.c.l.b16 %v85
  %v437 = vunpack.c.l.b16 %v86
  %v438 = vunpack.c.l.b16 %v87
  %v439 = vunpack.c.l.b16 %v88
  %v440 = vunpack.c.l.b16 %v89
  %v441 = vunpack.c.l.b16 %v90
  %v442 = vunpack.c.l.b16 %v91
  %v443 = vunpack.c.l.b16 %v92
  %v444 = vunpack.c.l.b16 %v93
  %v445 = vunpack.c.l.b16 %v94
  %v446 = vunpack.c.l.b16 %v95
  %v447 = vunpack.c.l.b16 %v96
  %v448 = vunpack.c.l.b16 %v97
  %v449 = vunpack.c.l.b16 %v98
  %v450 = vunpack.c.l.b16 %v99
  %v451 = vunpack.c.l.b16 %v100
  %v452 = vunpack.c.l.b16 %v101
  %v453 = vunpack.c.l.b16 %v102
  %v454 = vunpack.c.l.b16 %v103
  %v455 = vunpack.c.l.b16 %v104
  %v456 = vunpack.c.l.b16 %v105
  %v457 = vunpack.c.l.b16 %v106
  %v458 = vunpack.c.l.b16 %v107
  %v459 = vunpack.c.l.b16 %v108
  %v460 = vunpack.c.l.b16 %v109
  %v461 = vunpack.c.l.b16 %v110
  %v462 = vunpack.c.l.b16 %v111
  %v463 = vunpack.c.l.b16 %v112
  %v464 = vunpack.c.l.b16 %v113
  %v465 = vunpack.c.l.b16 %v114
  %v466 = vunpack.c.l.b16 %v115
  %v467 = vunpack.c.l.b16 %v116
  %v468 = vunpack.c.l.b16 %v117
  %v469 = vunpack.c.l.b16 %v118
  %v470 = vunpack.c.l.b16 %v119
  %v471 = vunpack.c.l.b16 %v120
  %v472 = vunpack.c.l.b16 %v121
  %v473 = vunpack.c.l.b16 %v122
  %v474 = vunpack.c.l.b16 %v123
  %v475 = vunpack.c.l.b16 %v124
  %v476 = vunpack.c.l.b16 %v125
  %v477 = vunpack.c.l.b16 %v126
  %v478 = vunpack.c.l.b16 %v127
  %v479 = vunpack.c.l.b16 %v128
  %v480 = vunpack.c.l.b16 %v129
  %v481 = vunpack.c.l.b16 %v130
  %v482 = vunpack.c.l.b16 %v131
  %v483 = vunpack.c.l.b16 %v132
  %v484 = vunpack.c.l.b16 %v133
  %v485 = vunpack.c.l.b16 %v134
  %v486 = vpack.c.b16 %v415, %v414
  %v487 = vpack.c.b16 %v417, %v416
  %v488 = vpack.c.b16 %v419, %v418
  %v489 = vpack.c.b16 %v421, %v420
  %v490 = vpack.c.b16 %v423, %v422
  %v491 = vpack.c.b16 %v425, %v424
  %v492 = vpack.c.b16 %v427, %v426
  %v493 = vpack.c.b16 %v429, %v428
  %v494 = vpack.c.b16 %v431, %v430
  %v495 = vpack.c.b16 %v433, %v432
  %v496 = vpack.c.b16 %v435, %v434
  %v497 = vpack.c.b16 %v437, %v436
  %v498 = vpack.c.b16 %v439, %v438
  %v499 = vpack.c.b16 %v441, %v440
  %v500 = vpack.c.b16 %v443, %v442
  %v501 = vpack.c.b16 %v445, %v444
  %v502 = vpack.c.b16 %v447, %v446
  %v503 = vpack.c.b16 %v449, %v448
  %v504 = vpack.c.b16 %v451, %v450
  %v505 = vpack.c.b16 %v453, %v452
  %v506 = vpack.c.b16 %v455, %v454
  %v507 = vpack.c.b16 %v457, %v456
  %v508 = vpack.c.b16 %v459, %v458
  %v509 = vpack.c.b16 %v461, %v460
  %v510 = vpack.c.b16 %v463, %v462
  %v511 = vpack.c.b16 %v465, %v464
  %v512 = vpack.c.b16 %v467, %v466
  %v513 = vpack.c.b16 %v469, %v468
  %v514 = vpack.c.b16 %v471, %v470
  %v515 = vpack.c.b16 %v473, %v472
  %v516 = vpack.c.b16 %v475, %v474
  %v517 = vpack.c.b16 %v477, %v476
  %v518 = vpack.c.b16 %v479, %v478
  %v519 = vpack.c.b16 %v481, %v480
  %v520 = vpack.c.b16 %v483, %v482
  %v521 = vpack.c.b16 %v485, %v484
  %vm558 = vcmask 523264
  %v560 = vsel %vm558, %v274, 0
  %v563 = vsel %vm558, %v279, 0
  %v566 = vsel %vm558, %v284, 0
  %v569 = vsel %vm558, %v289, 0
  %v572 = vsel %vm558, %v294, 0
  %v575 = vsel %vm558, %v299, 0
  %v578 = vsel %vm558, %v304, 0
  %v581 = vsel %vm558, %v309, 0
  %583 = vmatprep.subr.bf16.mxu0 0
  %584 = vmatpush1.bf16.msra.mxu0 %v486
  %585 = vmatprep.subr.bf16.mxu0 0
  %586 = vmatpush1.bf16.msra.mxu0 %v487
  %587 = vmatprep.subr.bf16.mxu0 0
  %588 = vmatpush1.bf16.msra.mxu0 %v488
  %589 = vmatprep.subr.bf16.mxu0 0
  %590 = vmatpush1.bf16.msra.mxu0 %v489
  %591 = vmatprep.subr.bf16.mxu0 0
  %592 = vmatpush1.bf16.msra.mxu0 %v490
  %593 = vmatprep.subr.bf16.mxu0 0
  %594 = vmatpush1.bf16.msra.mxu0 %v491
  %595 = vmatprep.subr.bf16.mxu0 0
  %596 = vmatpush1.bf16.msra.mxu0 %v492
  %597 = vmatprep.subr.bf16.mxu0 0
  %598 = vmatpush1.bf16.msra.mxu0 %v493
  %599 = vmatprep.subr.bf16.mxu0 0
  %600 = vmatpush1.bf16.msra.mxu0 %v494
  %601 = vmatprep.subr.bf16.mxu0 0
  %602 = vmatpush1.bf16.msra.mxu0 %v495
  %603 = vmatprep.subr.bf16.mxu0 0
  %604 = vmatpush1.bf16.msra.mxu0 %v496
  %605 = vmatprep.subr.bf16.mxu0 0
  %606 = vmatpush1.bf16.msra.mxu0 %v497
  %607 = vmatprep.subr.bf16.mxu0 0
  %608 = vmatpush1.bf16.msra.mxu0 %v498
  %609 = vmatprep.subr.bf16.mxu0 0
  %610 = vmatpush1.bf16.msra.mxu0 %v499
  %611 = vmatprep.subr.bf16.mxu0 0
  %612 = vmatpush1.bf16.msra.mxu0 %v500
  %613 = vmatprep.subr.bf16.mxu0 0
  %614 = vmatpush1.bf16.msra.mxu0 %v501
  %615 = vmatprep.mubr.bf16.mxu0 %v271
  %616 = vmatmul.mubr.bf16.gmra.mrb[0].mxu0 %v270
  %v617 = vpop.f32.mrb[0].mxu0
  %v618 = vadd.f32 %v140, %v617
  %v619 = vpop.f32.mrb[0].mxu0
  %v620 = vpop.f32.mrb[0].mxu0
  %v621 = vadd.f32 %v140, %v620
  %v622 = vpop.f32.mrb[0].mxu0
  %623 = vmatprep.mubr.bf16.mxu0 %v276
  %624 = vmatmul.mubr.bf16.gmra.mrb[0].mxu0 %v275
  %v625 = vpop.f32.mrb[0].mxu0
  %v626 = vadd.f32 %v140, %v625
  %v627 = vpop.f32.mrb[0].mxu0
  %v628 = vpop.f32.mrb[0].mxu0
  %v629 = vadd.f32 %v140, %v628
  %v630 = vpop.f32.mrb[0].mxu0
  %631 = vmatprep.mubr.bf16.mxu0 %v281
  %632 = vmatmul.mubr.bf16.gmra.mrb[0].mxu0 %v280
  %v633 = vpop.f32.mrb[0].mxu0
  %v634 = vadd.f32 %v140, %v633
  %v635 = vpop.f32.mrb[0].mxu0
  %v636 = vpop.f32.mrb[0].mxu0
  %v637 = vadd.f32 %v140, %v636
  %v638 = vpop.f32.mrb[0].mxu0
  %639 = vmatprep.mubr.bf16.mxu0 %v286
  %640 = vmatmul.mubr.bf16.gmra.mrb[0].mxu0 %v285
  %v641 = vpop.f32.mrb[0].mxu0
  %v642 = vadd.f32 %v140, %v641
  %v643 = vpop.f32.mrb[0].mxu0
  %v644 = vpop.f32.mrb[0].mxu0
  %v645 = vadd.f32 %v140, %v644
  %v646 = vpop.f32.mrb[0].mxu0
  %647 = vmatprep.mubr.bf16.mxu0 %v291
  %648 = vmatmul.mubr.bf16.gmra.mrb[0].mxu0 %v290
  %v649 = vpop.f32.mrb[0].mxu0
  %v650 = vadd.f32 %v140, %v649
  %v651 = vpop.f32.mrb[0].mxu0
  %v652 = vpop.f32.mrb[0].mxu0
  %v653 = vadd.f32 %v140, %v652
  %v654 = vpop.f32.mrb[0].mxu0
  %655 = vmatprep.mubr.bf16.mxu0 %v296
  %656 = vmatmul.mubr.bf16.gmra.mrb[0].mxu0 %v295
  %v657 = vpop.f32.mrb[0].mxu0
  %v658 = vadd.f32 %v140, %v657
  %v659 = vpop.f32.mrb[0].mxu0
  %v660 = vpop.f32.mrb[0].mxu0
  %v661 = vadd.f32 %v140, %v660
  %v662 = vpop.f32.mrb[0].mxu0
  %663 = vmatprep.mubr.bf16.mxu0 %v301
  %664 = vmatmul.mubr.bf16.gmra.mrb[0].mxu0 %v300
  %v665 = vpop.f32.mrb[0].mxu0
  %v666 = vadd.f32 %v140, %v665
  %v667 = vpop.f32.mrb[0].mxu0
  %v668 = vpop.f32.mrb[0].mxu0
  %v669 = vadd.f32 %v140, %v668
  %v670 = vpop.f32.mrb[0].mxu0
  %671 = vmatprep.mubr.bf16.mxu0 %v306
  %672 = vmatmul.mubr.bf16.gmra.mrb[0].mxu0 %v305
  %v673 = vpop.f32.mrb[0].mxu0
  %v674 = vadd.f32 %v140, %v673
  %v675 = vpop.f32.mrb[0].mxu0
  %v676 = vpop.f32.mrb[0].mxu0
  %v677 = vadd.f32 %v140, %v676
  %v678 = vpop.f32.mrb[0].mxu0
  %679 = vdwg.mxu0
  %680 = vmatprep.subr.bf16.mxu0 0
  %681 = vmatpush1.bf16.msra.mxu0 %v502
  %682 = vmatprep.subr.bf16.mxu0 0
  %683 = vmatpush1.bf16.msra.mxu0 %v503
  %684 = vmatprep.subr.bf16.mxu0 0
  %685 = vmatpush1.bf16.msra.mxu0 %v504
  %686 = vmatprep.subr.bf16.mxu0 0
  %687 = vmatpush1.bf16.msra.mxu0 %v505
  %688 = vmatprep.subr.bf16.mxu0 0
  %689 = vmatpush1.bf16.msra.mxu0 %v506
  %690 = vmatprep.subr.bf16.mxu0 0
  %691 = vmatpush1.bf16.msra.mxu0 %v507
  %692 = vmatprep.subr.bf16.mxu0 0
  %693 = vmatpush1.bf16.msra.mxu0 %v508
  %694 = vmatprep.subr.bf16.mxu0 0
  %695 = vmatpush1.bf16.msra.mxu0 %v509
  %696 = vmatprep.subr.bf16.mxu0 0
  %697 = vmatpush1.bf16.msra.mxu0 %v510
  %698 = vmatprep.subr.bf16.mxu0 0
  %699 = vmatpush1.bf16.msra.mxu0 %v511
  %700 = vmatprep.subr.bf16.mxu0 0
  %701 = vmatpush1.bf16.msra.mxu0 %v512
  %702 = vmatprep.subr.bf16.mxu0 0
  %703 = vmatpush1.bf16.msra.mxu0 %v513
  %704 = vmatprep.subr.bf16.mxu0 0
  %705 = vmatpush1.bf16.msra.mxu0 %v514
  %706 = vmatprep.subr.bf16.mxu0 0
  %707 = vmatpush1.bf16.msra.mxu0 %v515
  %708 = vmatprep.subr.bf16.mxu0 0
  %709 = vmatpush1.bf16.msra.mxu0 %v516
  %710 = vmatprep.subr.bf16.mxu0 0
  %711 = vmatpush1.bf16.msra.mxu0 %v517
  %712 = vmatprep.mubr.bf16.mxu0 %v273
  %713 = vmatmul.mubr.bf16.gmra.mrb[0].mxu0 %v272
  %v714 = vpop.f32.mrb[0].mxu0
  %v715 = vadd.f32 %v618, %v714
  %v716 = vpop.f32.mrb[0].mxu0
  %v717 = vpop.f32.mrb[0].mxu0
  %v718 = vadd.f32 %v621, %v717
  %v719 = vpop.f32.mrb[0].mxu0
  %720 = vmatprep.mubr.bf16.mxu0 %v278
  %721 = vmatmul.mubr.bf16.gmra.mrb[0].mxu0 %v277
  %v722 = vpop.f32.mrb[0].mxu0
  %v723 = vadd.f32 %v626, %v722
  %v724 = vpop.f32.mrb[0].mxu0
  %v725 = vpop.f32.mrb[0].mxu0
  %v726 = vadd.f32 %v629, %v725
  %v727 = vpop.f32.mrb[0].mxu0
  %728 = vmatprep.mubr.bf16.mxu0 %v283
  %729 = vmatmul.mubr.bf16.gmra.mrb[0].mxu0 %v282
  %v730 = vpop.f32.mrb[0].mxu0
  %v731 = vadd.f32 %v634, %v730
  %v732 = vpop.f32.mrb[0].mxu0
  %v733 = vpop.f32.mrb[0].mxu0
  %v734 = vadd.f32 %v637, %v733
  %v735 = vpop.f32.mrb[0].mxu0
  %736 = vmatprep.mubr.bf16.mxu0 %v288
  %737 = vmatmul.mubr.bf16.gmra.mrb[0].mxu0 %v287
  %v738 = vpop.f32.mrb[0].mxu0
  %v739 = vadd.f32 %v642, %v738
  %v740 = vpop.f32.mrb[0].mxu0
  %v741 = vpop.f32.mrb[0].mxu0
  %v742 = vadd.f32 %v645, %v741
  %v743 = vpop.f32.mrb[0].mxu0
  %744 = vmatprep.mubr.bf16.mxu0 %v293
  %745 = vmatmul.mubr.bf16.gmra.mrb[0].mxu0 %v292
  %v746 = vpop.f32.mrb[0].mxu0
  %v747 = vadd.f32 %v650, %v746
  %v748 = vpop.f32.mrb[0].mxu0
  %v749 = vpop.f32.mrb[0].mxu0
  %v750 = vadd.f32 %v653, %v749
  %v751 = vpop.f32.mrb[0].mxu0
  %752 = vmatprep.mubr.bf16.mxu0 %v298
  %753 = vmatmul.mubr.bf16.gmra.mrb[0].mxu0 %v297
  %v754 = vpop.f32.mrb[0].mxu0
  %v755 = vadd.f32 %v658, %v754
  %v756 = vpop.f32.mrb[0].mxu0
  %v757 = vpop.f32.mrb[0].mxu0
  %v758 = vadd.f32 %v661, %v757
  %v759 = vpop.f32.mrb[0].mxu0
  %760 = vmatprep.mubr.bf16.mxu0 %v303
  %761 = vmatmul.mubr.bf16.gmra.mrb[0].mxu0 %v302
  %v762 = vpop.f32.mrb[0].mxu0
  %v763 = vadd.f32 %v666, %v762
  %v764 = vpop.f32.mrb[0].mxu0
  %v765 = vpop.f32.mrb[0].mxu0
  %v766 = vadd.f32 %v669, %v765
  %v767 = vpop.f32.mrb[0].mxu0
  %768 = vmatprep.mubr.bf16.mxu0 %v308
  %769 = vmatmul.mubr.bf16.gmra.mrb[0].mxu0 %v307
  %v770 = vpop.f32.mrb[0].mxu0
  %v771 = vadd.f32 %v674, %v770
  %v772 = vpop.f32.mrb[0].mxu0
  %v773 = vpop.f32.mrb[0].mxu0
  %v774 = vadd.f32 %v677, %v773
  %v775 = vpop.f32.mrb[0].mxu0
  %776 = vdwg.mxu0
  %777 = vmatprep.subr.bf16.mxu0 0
  %778 = vmatpush1.bf16.msra.mxu0 %v518
  %779 = vmatprep.subr.bf16.mxu0 0
  %780 = vmatpush1.bf16.msra.mxu0 %v519
  %781 = vmatprep.subr.bf16.mxu0 0
  %782 = vmatpush1.bf16.msra.mxu0 %v520
  %783 = vmatprep.subr.bf16.mxu0 0
  %784 = vmatpush1.bf16.msra.mxu0 %v521
  %785 = vmatprep.subr.bf16.mxu0 0
  %786 = vmatpush1.bf16.msra.mxu0 0
  %787 = vmatprep.subr.bf16.mxu0 0
  %788 = vmatpush1.bf16.msra.mxu0 0
  %789 = vmatprep.subr.bf16.mxu0 0
  %790 = vmatpush1.bf16.msra.mxu0 0
  %791 = vmatprep.subr.bf16.mxu0 0
  %792 = vmatpush1.bf16.msra.mxu0 0
  %793 = vmatprep.subr.bf16.mxu0 0
  %794 = vmatpush1.bf16.msra.mxu0 0
  %795 = vmatprep.subr.bf16.mxu0 0
  %796 = vmatpush1.bf16.msra.mxu0 0
  %797 = vmatprep.subr.bf16.mxu0 0
  %798 = vmatpush1.bf16.msra.mxu0 0
  %799 = vmatprep.subr.bf16.mxu0 0
  %800 = vmatpush1.bf16.msra.mxu0 0
  %801 = vmatprep.subr.bf16.mxu0 0
  %802 = vmatpush1.bf16.msra.mxu0 0
  %803 = vmatprep.subr.bf16.mxu0 0
  %804 = vmatpush1.bf16.msra.mxu0 0
  %805 = vmatprep.subr.bf16.mxu0 0
  %806 = vmatpush1.bf16.msra.mxu0 0
  %807 = vmatprep.subr.bf16.mxu0 0
  %808 = vmatpush1.bf16.msra.mxu0 0
  %809 = vmatprep.mubr.bf16.mxu0 0
  %810 = vmatmul.mubr.bf16.gmra.mrb[0].mxu0 %v560
  %v811 = vpop.f32.mrb[0].mxu0
  %v812 = vadd.f32 %v715, %v811
  %v813 = vpop.f32.mrb[0].mxu0
  %v814 = vpop.f32.mrb[0].mxu0
  %v815 = vadd.f32 %v718, %v814
  %v816 = vpop.f32.mrb[0].mxu0
  %817 = vmatprep.mubr.bf16.mxu0 0
  %818 = vmatmul.mubr.bf16.gmra.mrb[0].mxu0 %v563
  %v819 = vpop.f32.mrb[0].mxu0
  %v820 = vadd.f32 %v723, %v819
  %v821 = vpop.f32.mrb[0].mxu0
  %v822 = vpop.f32.mrb[0].mxu0
  %v823 = vadd.f32 %v726, %v822
  %v824 = vpop.f32.mrb[0].mxu0
  %825 = vmatprep.mubr.bf16.mxu0 0
  %826 = vmatmul.mubr.bf16.gmra.mrb[0].mxu0 %v566
  %v827 = vpop.f32.mrb[0].mxu0
  %v828 = vadd.f32 %v731, %v827
  %v829 = vpop.f32.mrb[0].mxu0
  %v830 = vpop.f32.mrb[0].mxu0
  %v831 = vadd.f32 %v734, %v830
  %v832 = vpop.f32.mrb[0].mxu0
  %833 = vmatprep.mubr.bf16.mxu0 0
  %834 = vmatmul.mubr.bf16.gmra.mrb[0].mxu0 %v569
  %v835 = vpop.f32.mrb[0].mxu0
  %v836 = vadd.f32 %v739, %v835
  %v837 = vpop.f32.mrb[0].mxu0
  %v838 = vpop.f32.mrb[0].mxu0
  %v839 = vadd.f32 %v742, %v838
  %v840 = vpop.f32.mrb[0].mxu0
  %841 = vmatprep.mubr.bf16.mxu0 0
  %842 = vmatmul.mubr.bf16.gmra.mrb[0].mxu0 %v572
  %v843 = vpop.f32.mrb[0].mxu0
  %v844 = vadd.f32 %v747, %v843
  %v845 = vpop.f32.mrb[0].mxu0
  %v846 = vpop.f32.mrb[0].mxu0
  %v847 = vadd.f32 %v750, %v846
  %v848 = vpop.f32.mrb[0].mxu0
  %849 = vmatprep.mubr.bf16.mxu0 0
  %850 = vmatmul.mubr.bf16.gmra.mrb[0].mxu0 %v575
  %v851 = vpop.f32.mrb[0].mxu0
  %v852 = vadd.f32 %v755, %v851
  %v853 = vpop.f32.mrb[0].mxu0
  %v854 = vpop.f32.mrb[0].mxu0
  %v855 = vadd.f32 %v758, %v854
  %v856 = vpop.f32.mrb[0].mxu0
  %857 = vmatprep.mubr.bf16.mxu0 0
  %858 = vmatmul.mubr.bf16.gmra.mrb[0].mxu0 %v578
  %v859 = vpop.f32.mrb[0].mxu0
  %v860 = vadd.f32 %v763, %v859
  %v861 = vpop.f32.mrb[0].mxu0
  %v862 = vpop.f32.mrb[0].mxu0
  %v863 = vadd.f32 %v766, %v862
  %v864 = vpop.f32.mrb[0].mxu0
  %865 = vmatprep.mubr.bf16.mxu0 0
  %866 = vmatmul.mubr.bf16.gmra.mrb[0].mxu0 %v581
  %v867 = vpop.f32.mrb[0].mxu0
  %v868 = vadd.f32 %v771, %v867
  %v869 = vpop.f32.mrb[0].mxu0
  %v870 = vpop.f32.mrb[0].mxu0
  %v871 = vadd.f32 %v774, %v870
  %v872 = vpop.f32.mrb[0].mxu0
  %873 = vdwg.mxu0
  %v874 = vmul.f32 %v812, 0.2
  %v875 = vmul.f32 %v815, 0.2
  %v876 = vmul.f32 %v820, 0.2
  %v877 = vmul.f32 %v823, 0.2
  %v878 = vmul.f32 %v828, 0.2
  %v879 = vmul.f32 %v831, 0.2
  %v880 = vmul.f32 %v836, 0.2
  %v881 = vmul.f32 %v839, 0.2
  %v882 = vmul.f32 %v844, 0.2
  %v883 = vmul.f32 %v847, 0.2
  %v884 = vmul.f32 %v852, 0.2
  %v885 = vmul.f32 %v855, 0.2
  %v886 = vmul.f32 %v860, 0.2
  %v887 = vmul.f32 %v863, 0.2
  %v888 = vmul.f32 %v868, 0.2
  %v889 = vmul.f32 %v871, 0.2
  %v890 = vmax.f32 %v812, %v874
  %v891 = vmax.f32 %v815, %v875
  %v892 = vmax.f32 %v820, %v876
  %v893 = vmax.f32 %v823, %v877
  %v894 = vmax.f32 %v828, %v878
  %v895 = vmax.f32 %v831, %v879
  %v896 = vmax.f32 %v836, %v880
  %v897 = vmax.f32 %v839, %v881
  %v898 = vmax.f32 %v844, %v882
  %v899 = vmax.f32 %v847, %v883
  %v900 = vmax.f32 %v852, %v884
  %v901 = vmax.f32 %v855, %v885
  %v902 = vmax.f32 %v860, %v886
  %v903 = vmax.f32 %v863, %v887
  %v904 = vmax.f32 %v868, %v888
  %v905 = vmax.f32 %v871, %v889
  %v906 = vpack.c.bf16 %v891, %v890
  %v907 = vpack.c.bf16 %v893, %v892
  %v908 = vpack.c.bf16 %v895, %v894
  %v909 = vpack.c.bf16 %v897, %v896
  %v910 = vpack.c.bf16 %v899, %v898
  %v911 = vpack.c.bf16 %v901, %v900
  %v912 = vpack.c.bf16 %v903, %v902
  %v913 = vpack.c.bf16 %v905, %v904
  %v922 = vunpack.c.l.b16 %v906
  %v923 = vunpack.c.h.b16 %v906
  %v924 = vunpack.c.l.b16 %v907
  %v925 = vunpack.c.h.b16 %v907
  %v926 = vunpack.c.l.b16 %v908
  %v927 = vunpack.c.h.b16 %v908
  %v928 = vunpack.c.l.b16 %v909
  %v929 = vunpack.c.h.b16 %v909
  %v930 = vunpack.c.l.b16 %v910
  %v931 = vunpack.c.h.b16 %v910
  %v932 = vunpack.c.l.b16 %v911
  %v933 = vunpack.c.h.b16 %v911
  %v934 = vunpack.c.l.b16 %v912
  %v935 = vunpack.c.h.b16 %v912
  %v936 = vunpack.c.l.b16 %v913
  %v937 = vunpack.c.h.b16 %v913
  %v938 = vpack.c.b16 %v922, %v922
  %v939 = vpack.c.b16 %v923, %v923
  %v940 = vpack.c.b16 %v924, %v924
  %v941 = vpack.c.b16 %v925, %v925
  %v942 = vpack.c.b16 %v926, %v926
  %v943 = vpack.c.b16 %v927, %v927
  %v944 = vpack.c.b16 %v928, %v928
  %v945 = vpack.c.b16 %v929, %v929
  %v946 = vpack.c.b16 %v930, %v930
  %v947 = vpack.c.b16 %v931, %v931
  %v948 = vpack.c.b16 %v932, %v932
  %v949 = vpack.c.b16 %v933, %v933
  %v950 = vpack.c.b16 %v934, %v934
  %v951 = vpack.c.b16 %v935, %v935
  %v952 = vpack.c.b16 %v936, %v936
  %v953 = vpack.c.b16 %v937, %v937
  %970 = vst [vmem:[%s3] sm:$0xf] %v938
  %971 = vst [vmem:[%s3 + $0x4] sm:$0xf] %v939
  %972 = vst [vmem:[%s3 + $0x8] sm:$0xf] %v940
  %973 = vst [vmem:[%s3 + $0xc] sm:$0xf] %v941
  %974 = vst [vmem:[%s3 + $0x10] sm:$0xf] %v942
  %975 = vst [vmem:[%s3 + $0x14] sm:$0xf] %v943
  %976 = vst [vmem:[%s3 + $0x18] sm:$0xf] %v944
  %977 = vst [vmem:[%s3 + $0x1c] sm:$0xf] %v945
  %978 = vst [vmem:[%s3 + $0x20] sm:$0xf] %v946
  %979 = vst [vmem:[%s3 + $0x24] sm:$0xf] %v947
  %980 = vst [vmem:[%s3 + $0x28] sm:$0xf] %v948
  %981 = vst [vmem:[%s3 + $0x2c] sm:$0xf] %v949
  %982 = vst [vmem:[%s3 + $0x30] sm:$0xf] %v950
  %983 = vst [vmem:[%s3 + $0x34] sm:$0xf] %v951
  %984 = vst [vmem:[%s3 + $0x38] sm:$0xf] %v952
  %985 = vst [vmem:[%s3 + $0x3c] sm:$0xf] %v953
  // Predicated region
  $region14: #{discriminator_forward.3} parent=0 // pred_check
    _
  $region15: #{discriminator_forward.3} parent=0 // pred_check_branch
    %987 = sbr.rel (0) target = $region17
  $region16: #{discriminator_forward.3} parent=0 // pred_region
    _
  $region17: #{discriminator_forward.3} parent=0 // pred_fallthru
    _
  // Predicated region
  $region18: #{discriminator_forward.3} parent=0 // pred_check
    _
  $region19: #{discriminator_forward.3} parent=0 // pred_check_branch
    %989 = sbr.rel (0) target = $region21
  $region20: #{discriminator_forward.3} parent=0 // pred_region
    _
  $region21: #{discriminator_forward.3} parent=0 // pred_fallthru
    _

</llo_original>
